<compile_context>
chip_gen: v6e
topology: v6e:2x2x1
jax: 0.10.0
libtpu: 0.0.40
codegen_flags: <defaults>
</compile_context>

<pallas_src>
import jax
import jax.numpy as jnp
import numpy as np
from jax.experimental import pallas as pl
from jax.experimental.pallas import tpu as pltpu


def _gru_net_kernel(x_ref, wih_ref, whh_ref, bih_ref, bhh_ref,
                    wfc_ref, bfc_ref, o_ref, gx_scr):
    Bp = o_ref.shape[0]                 # padded batch (multiple of 8)
    HP = whh_ref.shape[0]               # padded hidden (multiple of 128)
    HP3 = whh_ref.shape[1]              # 3 * HP (one 128-lane block per gate)
    T = x_ref.shape[0] // Bp

    # ---- One big MXU dot for the input projection over all T steps. ----
    # (T*Bp, I) @ (I, 3*HP) + b_ih  -> stored once in VMEM scratch.
    gx_scr[...] = (jnp.dot(x_ref[...], wih_ref[...],
                           preferred_element_type=jnp.float32)
                   + bih_ref[...])

    # ---- Loop invariants hoisted out of the recurrence. ----
    whh = whh_ref[...]                                    # (HP, 3*HP)
    bhh = jnp.broadcast_to(bhh_ref[...], (Bp, HP3))       # hoisted broadcast

    def step(t, h):
        start = pl.multiple_of(t * Bp, Bp)
        gx = gx_scr[pl.ds(start, Bp), :]                  # (Bp, 3*HP) precomputed
        gh = jnp.dot(h, whh, preferred_element_type=jnp.float32) + bhh
        # PyTorch GRU: r, z, n   (note b_hn stays inside gh_n, scaled by r)
        r = jax.nn.sigmoid(gx[:, 0:HP] + gh[:, 0:HP])
        z = jax.nn.sigmoid(gx[:, HP:2 * HP] + gh[:, HP:2 * HP])
        n = jnp.tanh(gx[:, 2 * HP:3 * HP] + r * gh[:, 2 * HP:3 * HP])
        return (1.0 - z) * n + z * h

    h_n = jax.lax.fori_loop(0, T, step,
                            jnp.zeros((Bp, HP), jnp.float32),
                            unroll=True)

    # ---- hn -> ReLU -> fc (H, 1) ----
    out = jnp.dot(jnp.maximum(h_n, 0.0), wfc_ref[...],
                  preferred_element_type=jnp.float32) + bfc_ref[...]
    o_ref[...] = out.astype(o_ref.dtype)


def gru_net_forward(x, packed):
    """x: (B, T, input_size) float32. Returns (B, 1) float32."""
    B, T, I = x.shape
    HP = packed["whh"].shape[0]
    HP3 = 3 * HP
    Bp = ((B + 7) // 8) * 8              # fill f32 sublanes

    x_tm = jnp.transpose(x, (1, 0, 2))                       # (T, B, I) time-major
    if Bp != B:
        x_tm = jnp.pad(x_tm, ((0, 0), (0, Bp - B), (0, 0)))
    x2d = x_tm.reshape(T * Bp, I).astype(jnp.float32)         # (T*Bp, I)

    def full(shape):
        return pl.BlockSpec(shape, lambda i, n=len(shape): (0,) * n)

    out = pl.pallas_call(
        _gru_net_kernel,
        out_shape=jax.ShapeDtypeStruct((Bp, 1), jnp.float32),
        grid_spec=pltpu.PrefetchScalarGridSpec(
            num_scalar_prefetch=0,
            grid=(1,),                                        # single program; recurrence is in-kernel
            in_specs=[
                full((T * Bp, I)),      # x (time-major, batch-padded, flattened)
                full((I, HP3)),         # W_ih^T, gate blocks 128-lane aligned
                full((HP, HP3)),        # W_hh^T
                full((1, HP3)),         # b_ih
                full((1, HP3)),         # b_hh
                full((HP, 1)),          # fc W^T
                full((1, 1)),           # fc b
            ],
            out_specs=full((Bp, 1)),
            scratch_shapes=[
                pltpu.VMEM((T * Bp, HP3), jnp.float32),       # precomputed x-gates
            ],
        ),
        compiler_params=pltpu.CompilerParams(
            dimension_semantics=("arbitrary",)),
    )(x2d, packed["wih"], packed["whh"], packed["bih"], packed["bhh"],
      packed["wfc"], packed["bfc"])
    return out[:B]


def init_params(key, input_size, hidden_size):
    """Raw parameters with the same shapes/init ranges as the PyTorch module."""
    H = hidden_size
    ks = jax.random.split(key, 6)
    s = 1.0 / np.sqrt(H)
    w_ih = jax.random.uniform(ks[0], (3 * H, input_size), jnp.float32, -s, s)
    w_hh = jax.random.uniform(ks[1], (3 * H, H), jnp.float32, -s, s)
    b_ih = jax.random.uniform(ks[2], (3 * H,), jnp.float32, -s, s)
    b_hh = jax.random.uniform(ks[3], (3 * H,), jnp.float32, -s, s)
    sf = 1.0 / np.sqrt(H)
    w_fc = jax.random.uniform(ks[4], (1, H), jnp.float32, -sf, sf)
    b_fc = jax.random.uniform(ks[5], (1,), jnp.float32, -sf, sf)
    return {"w_ih": w_ih, "w_hh": w_hh, "b_ih": b_ih, "b_hh": b_hh,
            "w_fc": w_fc, "b_fc": b_fc}


def pack_params(params, lane=128):
    """Transpose + pad weights so each GRU gate owns a 128-lane block."""
    w_ih = np.asarray(params["w_ih"], np.float32)   # (3H, I)
    w_hh = np.asarray(params["w_hh"], np.float32)   # (3H, H)
    b_ih = np.asarray(params["b_ih"], np.float32)   # (3H,)
    b_hh = np.asarray(params["b_hh"], np.float32)   # (3H,)
    w_fc = np.asarray(params["w_fc"], np.float32)   # (1, H)
    b_fc = np.asarray(params["b_fc"], np.float32)   # (1,)

    H = w_hh.shape[1]
    I = w_ih.shape[1]
    HP = ((H + lane - 1) // lane) * lane

    wih_p = np.zeros((I, 3 * HP), np.float32)
    whh_p = np.zeros((HP, 3 * HP), np.float32)
    bih_p = np.zeros((1, 3 * HP), np.float32)
    bhh_p = np.zeros((1, 3 * HP), np.float32)
    for g in range(3):                               # PyTorch gate order r, z, n
        wih_p[:, g * HP:g * HP + H] = w_ih[g * H:(g + 1) * H, :].T
        whh_p[:H, g * HP:g * HP + H] = w_hh[g * H:(g + 1) * H, :].T
        bih_p[0, g * HP:g * HP + H] = b_ih[g * H:(g + 1) * H]
        bhh_p[0, g * HP:g * HP + H] = b_hh[g * H:(g + 1) * H]

    wfc_p = np.zeros((HP, 1), np.float32)
    wfc_p[:H, 0] = w_fc[0, :]
    bfc_p = b_fc.reshape(1, 1)

    return {"wih": jnp.asarray(wih_p), "whh": jnp.asarray(whh_p),
            "bih": jnp.asarray(bih_p), "bhh": jnp.asarray(bhh_p),
            "wfc": jnp.asarray(wfc_p), "bfc": jnp.asarray(bfc_p)}


def reference_forward(x, params):
    """Pure-JAX reference of the same forward (PyTorch GRU semantics)."""
    B, T, I = x.shape
    H = params["w_hh"].shape[1]
    w_ih, w_hh = params["w_ih"], params["w_hh"]
    b_ih, b_hh = params["b_ih"], params["b_hh"]
    h = jnp.zeros((B, H), jnp.float32)
    for t in range(T):
        gi = x[:, t, :] @ w_ih.T + b_ih
        gh = h @ w_hh.T + b_hh
        r = jax.nn.sigmoid(gi[:, 0:H] + gh[:, 0:H])
        z = jax.nn.sigmoid(gi[:, H:2 * H] + gh[:, H:2 * H])
        n = jnp.tanh(gi[:, 2 * H:3 * H] + r * gh[:, 2 * H:3 * H])
        h = (1.0 - z) * n + z * h
    out = jnp.maximum(h, 0.0) @ params["w_fc"].T + params["b_fc"]
    return out                                           # (B, 1)


if __name__ == "__main__":
    B, T, INPUT_SIZE, HIDDEN = 2, 8, 4, 32               # num_layers = 1

    key = jax.random.PRNGKey(0)
    k_x, k_p = jax.random.split(key)
    x = jax.random.normal(k_x, (B, T, INPUT_SIZE), jnp.float32)
    params = init_params(k_p, INPUT_SIZE, HIDDEN)
    packed = pack_params(params)

    out = gru_net_forward(x, packed)
    out = jax.block_until_ready(out)

    ref = reference_forward(x, params)
    assert out.shape == (B, 1)
    np.testing.assert_allclose(np.asarray(out), np.asarray(ref),
                               rtol=1e-4, atol=1e-5)

    print("KERNEL_OK")
</pallas_src>

<mosaic_0001>
module attributes {stable_mosaic.version = 11 : i64} {
  func.func @_gru_net_kernel(%arg0: i32, %arg1: memref<64x4xf32, #tpu.memory_space<vmem>>, %arg2: memref<4x384xf32, #tpu.memory_space<vmem>>, %arg3: memref<128x384xf32, #tpu.memory_space<vmem>>, %arg4: memref<1x384xf32, #tpu.memory_space<vmem>>, %arg5: memref<1x384xf32, #tpu.memory_space<vmem>>, %arg6: memref<128x1xf32, #tpu.memory_space<vmem>>, %arg7: memref<1x1xf32, #tpu.memory_space<vmem>>, %arg8: memref<8x1xf32, #tpu.memory_space<vmem>>, %arg9: memref<64x384xf32, #tpu.memory_space<vmem>>) attributes {dimension_semantics = [#tpu.dimension_semantics<arbitrary>], iteration_bounds = array<i64: 1>, scalar_prefetch = 0 : i64, scratch_operands = 1 : i64, tpu.core_type = #tpu.core_type<tc>, window_params = [{pipeline_mode = #tpu.pipeline_mode<synchronous>, transform_indices = @transform_0, window_bounds = array<i64: 64, 4>}, {pipeline_mode = #tpu.pipeline_mode<synchronous>, transform_indices = @transform_1, window_bounds = array<i64: 4, 384>}, {pipeline_mode = #tpu.pipeline_mode<synchronous>, transform_indices = @transform_2, window_bounds = array<i64: 128, 384>}, {pipeline_mode = #tpu.pipeline_mode<synchronous>, transform_indices = @transform_3, window_bounds = array<i64: 1, 384>}, {pipeline_mode = #tpu.pipeline_mode<synchronous>, transform_indices = @transform_4, window_bounds = array<i64: 1, 384>}, {pipeline_mode = #tpu.pipeline_mode<synchronous>, transform_indices = @transform_5, window_bounds = array<i64: 128, 1>}, {pipeline_mode = #tpu.pipeline_mode<synchronous>, transform_indices = @transform_6, window_bounds = array<i64: 1, 1>}, {pipeline_mode = #tpu.pipeline_mode<synchronous>, transform_indices = @transform_7, window_bounds = array<i64: 8, 1>}]} {
    %c0 = arith.constant 0 : index
    %c0_0 = arith.constant 0 : index
    %0 = vector.load %arg1[%c0, %c0_0] : memref<64x4xf32, #tpu.memory_space<vmem>>, vector<64x4xf32>
    %c0_1 = arith.constant 0 : index
    %c0_2 = arith.constant 0 : index
    %1 = vector.load %arg2[%c0_1, %c0_2] : memref<4x384xf32, #tpu.memory_space<vmem>>, vector<4x384xf32>
    %cst = arith.constant dense<0.000000e+00> : vector<64x384xf32>
    %2 = tpu.matmul %0, %1, %cst {dimension_numbers = #tpu.dot_dimension_numbers<[1], [0], [0], [1], [0, 0, 1, 1], [], []>} : vector<64x4xf32>, vector<4x384xf32>, vector<64x384xf32> -> vector<64x384xf32>
    %c0_3 = arith.constant 0 : index
    %c0_4 = arith.constant 0 : index
    %3 = vector.load %arg4[%c0_3, %c0_4] : memref<1x384xf32, #tpu.memory_space<vmem>>, vector<1x384xf32>
    %4 = vector.broadcast %3 : vector<1x384xf32> to vector<64x384xf32>
    %5 = arith.addf %2, %4 : vector<64x384xf32>
    %c0_5 = arith.constant 0 : index
    %c0_6 = arith.constant 0 : index
    %6 = vector.load %arg9[%c0_5, %c0_6] : memref<64x384xf32, #tpu.memory_space<vmem>>, vector<64x384xf32>
    tpu.vector_store %arg9[%c0_5, %c0_6], %5 {strides = array<i32>} : memref<64x384xf32, #tpu.memory_space<vmem>>, vector<64x384xf32>,
    %c0_7 = arith.constant 0 : index
    %c0_8 = arith.constant 0 : index
    %7 = vector.load %arg3[%c0_7, %c0_8] : memref<128x384xf32, #tpu.memory_space<vmem>>, vector<128x384xf32>
    %c0_9 = arith.constant 0 : index
    %c0_10 = arith.constant 0 : index
    %8 = vector.load %arg5[%c0_9, %c0_10] : memref<1x384xf32, #tpu.memory_space<vmem>>, vector<1x384xf32>
    %9 = vector.shape_cast %8 : vector<1x384xf32> to vector<1x384xf32>
    %10 = vector.broadcast %9 : vector<1x384xf32> to vector<8x384xf32>
    %cst_11 = arith.constant 0.000000e+00 : f32
    %11 = vector.broadcast %cst_11 : f32 to vector<8x128xf32>
    %c0_i32 = arith.constant 0 : i32
    %c8_i32 = arith.constant 8 : i32
    %12 = arith.muli %c0_i32, %c8_i32 : i32
    %13 = tpu.assume_multiple %12, 8 : i32
    %14 = arith.index_cast %13 : i32 to index
    %c0_12 = arith.constant 0 : index
    %15 = vector.load %arg9[%14, %c0_12] : memref<64x384xf32, #tpu.memory_space<vmem>>, vector<8x384xf32>
    %cst_13 = arith.constant dense<0.000000e+00> : vector<8x384xf32>
    %16 = tpu.matmul %11, %7, %cst_13 {dimension_numbers = #tpu.dot_dimension_numbers<[1], [0], [0], [1], [0, 0, 1, 1], [], []>} : vector<8x128xf32>, vector<128x384xf32>, vector<8x384xf32> -> vector<8x384xf32>
    %17 = arith.addf %16, %10 : vector<8x384xf32>
    %18 = vector.extract_strided_slice %15 {offsets = [0, 0], sizes = [8, 128], strides = [1, 1]} : vector<8x384xf32> to vector<8x128xf32>
    %19 = vector.extract_strided_slice %17 {offsets = [0, 0], sizes = [8, 128], strides = [1, 1]} : vector<8x384xf32> to vector<8x128xf32>
    %20 = arith.addf %18, %19 : vector<8x128xf32>
    %21 = arith.negf %20 : vector<8x128xf32>
    %22 = math.exp %21 : vector<8x128xf32>
    %cst_14 = arith.constant 1.000000e+00 : f32
    %23 = vector.broadcast %cst_14 : f32 to vector<8x128xf32>
    %24 = arith.addf %23, %22 : vector<8x128xf32>
    %25 = arith.divf %23, %24 : vector<8x128xf32>
    %26 = vector.extract_strided_slice %15 {offsets = [0, 128], sizes = [8, 128], strides = [1, 1]} : vector<8x384xf32> to vector<8x128xf32>
    %27 = vector.extract_strided_slice %17 {offsets = [0, 128], sizes = [8, 128], strides = [1, 1]} : vector<8x384xf32> to vector<8x128xf32>
    %28 = arith.addf %26, %27 : vector<8x128xf32>
    %29 = arith.negf %28 : vector<8x128xf32>
    %30 = math.exp %29 : vector<8x128xf32>
    %cst_15 = arith.constant 1.000000e+00 : f32
    %31 = vector.broadcast %cst_15 : f32 to vector<8x128xf32>
    %32 = arith.addf %31, %30 : vector<8x128xf32>
    %33 = arith.divf %31, %32 : vector<8x128xf32>
    %34 = vector.extract_strided_slice %15 {offsets = [0, 256], sizes = [8, 128], strides = [1, 1]} : vector<8x384xf32> to vector<8x128xf32>
    %35 = vector.extract_strided_slice %17 {offsets = [0, 256], sizes = [8, 128], strides = [1, 1]} : vector<8x384xf32> to vector<8x128xf32>
    %36 = arith.mulf %25, %35 : vector<8x128xf32>
    %37 = arith.addf %34, %36 : vector<8x128xf32>
    %38 = math.tanh %37 : vector<8x128xf32>
    %cst_16 = arith.constant 1.000000e+00 : f32
    %39 = vector.broadcast %cst_16 : f32 to vector<8x128xf32>
    %40 = arith.subf %39, %33 : vector<8x128xf32>
    %41 = arith.mulf %40, %38 : vector<8x128xf32>
    %42 = arith.mulf %33, %11 : vector<8x128xf32>
    %43 = arith.addf %41, %42 : vector<8x128xf32>
    %c1_i32 = arith.constant 1 : i32
    %c8_i32_17 = arith.constant 8 : i32
    %44 = arith.muli %c1_i32, %c8_i32_17 : i32
    %45 = tpu.assume_multiple %44, 8 : i32
    %46 = arith.index_cast %45 : i32 to index
    %c0_18 = arith.constant 0 : index
    %47 = vector.load %arg9[%46, %c0_18] : memref<64x384xf32, #tpu.memory_space<vmem>>, vector<8x384xf32>
    %cst_19 = arith.constant dense<0.000000e+00> : vector<8x384xf32>
    %48 = tpu.matmul %43, %7, %cst_19 {dimension_numbers = #tpu.dot_dimension_numbers<[1], [0], [0], [1], [0, 0, 1, 1], [], []>} : vector<8x128xf32>, vector<128x384xf32>, vector<8x384xf32> -> vector<8x384xf32>
    %49 = arith.addf %48, %10 : vector<8x384xf32>
    %50 = vector.extract_strided_slice %47 {offsets = [0, 0], sizes = [8, 128], strides = [1, 1]} : vector<8x384xf32> to vector<8x128xf32>
    %51 = vector.extract_strided_slice %49 {offsets = [0, 0], sizes = [8, 128], strides = [1, 1]} : vector<8x384xf32> to vector<8x128xf32>
    %52 = arith.addf %50, %51 : vector<8x128xf32>
    %53 = arith.negf %52 : vector<8x128xf32>
    %54 = math.exp %53 : vector<8x128xf32>
    %cst_20 = arith.constant 1.000000e+00 : f32
    %55 = vector.broadcast %cst_20 : f32 to vector<8x128xf32>
    %56 = arith.addf %55, %54 : vector<8x128xf32>
    %57 = arith.divf %55, %56 : vector<8x128xf32>
    %58 = vector.extract_strided_slice %47 {offsets = [0, 128], sizes = [8, 128], strides = [1, 1]} : vector<8x384xf32> to vector<8x128xf32>
    %59 = vector.extract_strided_slice %49 {offsets = [0, 128], sizes = [8, 128], strides = [1, 1]} : vector<8x384xf32> to vector<8x128xf32>
    %60 = arith.addf %58, %59 : vector<8x128xf32>
    %61 = arith.negf %60 : vector<8x128xf32>
    %62 = math.exp %61 : vector<8x128xf32>
    %cst_21 = arith.constant 1.000000e+00 : f32
    %63 = vector.broadcast %cst_21 : f32 to vector<8x128xf32>
    %64 = arith.addf %63, %62 : vector<8x128xf32>
    %65 = arith.divf %63, %64 : vector<8x128xf32>
    %66 = vector.extract_strided_slice %47 {offsets = [0, 256], sizes = [8, 128], strides = [1, 1]} : vector<8x384xf32> to vector<8x128xf32>
    %67 = vector.extract_strided_slice %49 {offsets = [0, 256], sizes = [8, 128], strides = [1, 1]} : vector<8x384xf32> to vector<8x128xf32>
    %68 = arith.mulf %57, %67 : vector<8x128xf32>
    %69 = arith.addf %66, %68 : vector<8x128xf32>
    %70 = math.tanh %69 : vector<8x128xf32>
    %cst_22 = arith.constant 1.000000e+00 : f32
    %71 = vector.broadcast %cst_22 : f32 to vector<8x128xf32>
    %72 = arith.subf %71, %65 : vector<8x128xf32>
    %73 = arith.mulf %72, %70 : vector<8x128xf32>
    %74 = arith.mulf %65, %43 : vector<8x128xf32>
    %75 = arith.addf %73, %74 : vector<8x128xf32>
    %c2_i32 = arith.constant 2 : i32
    %c8_i32_23 = arith.constant 8 : i32
    %76 = arith.muli %c2_i32, %c8_i32_23 : i32
    %77 = tpu.assume_multiple %76, 8 : i32
    %78 = arith.index_cast %77 : i32 to index
    %c0_24 = arith.constant 0 : index
    %79 = vector.load %arg9[%78, %c0_24] : memref<64x384xf32, #tpu.memory_space<vmem>>, vector<8x384xf32>
    %cst_25 = arith.constant dense<0.000000e+00> : vector<8x384xf32>
    %80 = tpu.matmul %75, %7, %cst_25 {dimension_numbers = #tpu.dot_dimension_numbers<[1], [0], [0], [1], [0, 0, 1, 1], [], []>} : vector<8x128xf32>, vector<128x384xf32>, vector<8x384xf32> -> vector<8x384xf32>
    %81 = arith.addf %80, %10 : vector<8x384xf32>
    %82 = vector.extract_strided_slice %79 {offsets = [0, 0], sizes = [8, 128], strides = [1, 1]} : vector<8x384xf32> to vector<8x128xf32>
    %83 = vector.extract_strided_slice %81 {offsets = [0, 0], sizes = [8, 128], strides = [1, 1]} : vector<8x384xf32> to vector<8x128xf32>
    %84 = arith.addf %82, %83 : vector<8x128xf32>
    %85 = arith.negf %84 : vector<8x128xf32>
    %86 = math.exp %85 : vector<8x128xf32>
    %cst_26 = arith.constant 1.000000e+00 : f32
    %87 = vector.broadcast %cst_26 : f32 to vector<8x128xf32>
    %88 = arith.addf %87, %86 : vector<8x128xf32>
    %89 = arith.divf %87, %88 : vector<8x128xf32>
    %90 = vector.extract_strided_slice %79 {offsets = [0, 128], sizes = [8, 128], strides = [1, 1]} : vector<8x384xf32> to vector<8x128xf32>
    %91 = vector.extract_strided_slice %81 {offsets = [0, 128], sizes = [8, 128], strides = [1, 1]} : vector<8x384xf32> to vector<8x128xf32>
    %92 = arith.addf %90, %91 : vector<8x128xf32>
    %93 = arith.negf %92 : vector<8x128xf32>
    %94 = math.exp %93 : vector<8x128xf32>
    %cst_27 = arith.constant 1.000000e+00 : f32
    %95 = vector.broadcast %cst_27 : f32 to vector<8x128xf32>
    %96 = arith.addf %95, %94 : vector<8x128xf32>
    %97 = arith.divf %95, %96 : vector<8x128xf32>
    %98 = vector.extract_strided_slice %79 {offsets = [0, 256], sizes = [8, 128], strides = [1, 1]} : vector<8x384xf32> to vector<8x128xf32>
    %99 = vector.extract_strided_slice %81 {offsets = [0, 256], sizes = [8, 128], strides = [1, 1]} : vector<8x384xf32> to vector<8x128xf32>
    %100 = arith.mulf %89, %99 : vector<8x128xf32>
    %101 = arith.addf %98, %100 : vector<8x128xf32>
    %102 = math.tanh %101 : vector<8x128xf32>
    %cst_28 = arith.constant 1.000000e+00 : f32
    %103 = vector.broadcast %cst_28 : f32 to vector<8x128xf32>
    %104 = arith.subf %103, %97 : vector<8x128xf32>
    %105 = arith.mulf %104, %102 : vector<8x128xf32>
    %106 = arith.mulf %97, %75 : vector<8x128xf32>
    %107 = arith.addf %105, %106 : vector<8x128xf32>
    %c3_i32 = arith.constant 3 : i32
    %c8_i32_29 = arith.constant 8 : i32
    %108 = arith.muli %c3_i32, %c8_i32_29 : i32
    %109 = tpu.assume_multiple %108, 8 : i32
    %110 = arith.index_cast %109 : i32 to index
    %c0_30 = arith.constant 0 : index
    %111 = vector.load %arg9[%110, %c0_30] : memref<64x384xf32, #tpu.memory_space<vmem>>, vector<8x384xf32>
    %cst_31 = arith.constant dense<0.000000e+00> : vector<8x384xf32>
    %112 = tpu.matmul %107, %7, %cst_31 {dimension_numbers = #tpu.dot_dimension_numbers<[1], [0], [0], [1], [0, 0, 1, 1], [], []>} : vector<8x128xf32>, vector<128x384xf32>, vector<8x384xf32> -> vector<8x384xf32>
    %113 = arith.addf %112, %10 : vector<8x384xf32>
    %114 = vector.extract_strided_slice %111 {offsets = [0, 0], sizes = [8, 128], strides = [1, 1]} : vector<8x384xf32> to vector<8x128xf32>
    %115 = vector.extract_strided_slice %113 {offsets = [0, 0], sizes = [8, 128], strides = [1, 1]} : vector<8x384xf32> to vector<8x128xf32>
    %116 = arith.addf %114, %115 : vector<8x128xf32>
    %117 = arith.negf %116 : vector<8x128xf32>
    %118 = math.exp %117 : vector<8x128xf32>
    %cst_32 = arith.constant 1.000000e+00 : f32
    %119 = vector.broadcast %cst_32 : f32 to vector<8x128xf32>
    %120 = arith.addf %119, %118 : vector<8x128xf32>
    %121 = arith.divf %119, %120 : vector<8x128xf32>
    %122 = vector.extract_strided_slice %111 {offsets = [0, 128], sizes = [8, 128], strides = [1, 1]} : vector<8x384xf32> to vector<8x128xf32>
    %123 = vector.extract_strided_slice %113 {offsets = [0, 128], sizes = [8, 128], strides = [1, 1]} : vector<8x384xf32> to vector<8x128xf32>
    %124 = arith.addf %122, %123 : vector<8x128xf32>
    %125 = arith.negf %124 : vector<8x128xf32>
    %126 = math.exp %125 : vector<8x128xf32>
    %cst_33 = arith.constant 1.000000e+00 : f32
    %127 = vector.broadcast %cst_33 : f32 to vector<8x128xf32>
    %128 = arith.addf %127, %126 : vector<8x128xf32>
    %129 = arith.divf %127, %128 : vector<8x128xf32>
    %130 = vector.extract_strided_slice %111 {offsets = [0, 256], sizes = [8, 128], strides = [1, 1]} : vector<8x384xf32> to vector<8x128xf32>
    %131 = vector.extract_strided_slice %113 {offsets = [0, 256], sizes = [8, 128], strides = [1, 1]} : vector<8x384xf32> to vector<8x128xf32>
    %132 = arith.mulf %121, %131 : vector<8x128xf32>
    %133 = arith.addf %130, %132 : vector<8x128xf32>
    %134 = math.tanh %133 : vector<8x128xf32>
    %cst_34 = arith.constant 1.000000e+00 : f32
    %135 = vector.broadcast %cst_34 : f32 to vector<8x128xf32>
    %136 = arith.subf %135, %129 : vector<8x128xf32>
    %137 = arith.mulf %136, %134 : vector<8x128xf32>
    %138 = arith.mulf %129, %107 : vector<8x128xf32>
    %139 = arith.addf %137, %138 : vector<8x128xf32>
    %c4_i32 = arith.constant 4 : i32
    %c8_i32_35 = arith.constant 8 : i32
    %140 = arith.muli %c4_i32, %c8_i32_35 : i32
    %141 = tpu.assume_multiple %140, 8 : i32
    %142 = arith.index_cast %141 : i32 to index
    %c0_36 = arith.constant 0 : index
    %143 = vector.load %arg9[%142, %c0_36] : memref<64x384xf32, #tpu.memory_space<vmem>>, vector<8x384xf32>
    %cst_37 = arith.constant dense<0.000000e+00> : vector<8x384xf32>
    %144 = tpu.matmul %139, %7, %cst_37 {dimension_numbers = #tpu.dot_dimension_numbers<[1], [0], [0], [1], [0, 0, 1, 1], [], []>} : vector<8x128xf32>, vector<128x384xf32>, vector<8x384xf32> -> vector<8x384xf32>
    %145 = arith.addf %144, %10 : vector<8x384xf32>
    %146 = vector.extract_strided_slice %143 {offsets = [0, 0], sizes = [8, 128], strides = [1, 1]} : vector<8x384xf32> to vector<8x128xf32>
    %147 = vector.extract_strided_slice %145 {offsets = [0, 0], sizes = [8, 128], strides = [1, 1]} : vector<8x384xf32> to vector<8x128xf32>
    %148 = arith.addf %146, %147 : vector<8x128xf32>
    %149 = arith.negf %148 : vector<8x128xf32>
    %150 = math.exp %149 : vector<8x128xf32>
    %cst_38 = arith.constant 1.000000e+00 : f32
    %151 = vector.broadcast %cst_38 : f32 to vector<8x128xf32>
    %152 = arith.addf %151, %150 : vector<8x128xf32>
    %153 = arith.divf %151, %152 : vector<8x128xf32>
    %154 = vector.extract_strided_slice %143 {offsets = [0, 128], sizes = [8, 128], strides = [1, 1]} : vector<8x384xf32> to vector<8x128xf32>
    %155 = vector.extract_strided_slice %145 {offsets = [0, 128], sizes = [8, 128], strides = [1, 1]} : vector<8x384xf32> to vector<8x128xf32>
    %156 = arith.addf %154, %155 : vector<8x128xf32>
    %157 = arith.negf %156 : vector<8x128xf32>
    %158 = math.exp %157 : vector<8x128xf32>
    %cst_39 = arith.constant 1.000000e+00 : f32
    %159 = vector.broadcast %cst_39 : f32 to vector<8x128xf32>
    %160 = arith.addf %159, %158 : vector<8x128xf32>
    %161 = arith.divf %159, %160 : vector<8x128xf32>
    %162 = vector.extract_strided_slice %143 {offsets = [0, 256], sizes = [8, 128], strides = [1, 1]} : vector<8x384xf32> to vector<8x128xf32>
    %163 = vector.extract_strided_slice %145 {offsets = [0, 256], sizes = [8, 128], strides = [1, 1]} : vector<8x384xf32> to vector<8x128xf32>
    %164 = arith.mulf %153, %163 : vector<8x128xf32>
    %165 = arith.addf %162, %164 : vector<8x128xf32>
    %166 = math.tanh %165 : vector<8x128xf32>
    %cst_40 = arith.constant 1.000000e+00 : f32
    %167 = vector.broadcast %cst_40 : f32 to vector<8x128xf32>
    %168 = arith.subf %167, %161 : vector<8x128xf32>
    %169 = arith.mulf %168, %166 : vector<8x128xf32>
    %170 = arith.mulf %161, %139 : vector<8x128xf32>
    %171 = arith.addf %169, %170 : vector<8x128xf32>
    %c5_i32 = arith.constant 5 : i32
    %c8_i32_41 = arith.constant 8 : i32
    %172 = arith.muli %c5_i32, %c8_i32_41 : i32
    %173 = tpu.assume_multiple %172, 8 : i32
    %174 = arith.index_cast %173 : i32 to index
    %c0_42 = arith.constant 0 : index
    %175 = vector.load %arg9[%174, %c0_42] : memref<64x384xf32, #tpu.memory_space<vmem>>, vector<8x384xf32>
    %cst_43 = arith.constant dense<0.000000e+00> : vector<8x384xf32>
    %176 = tpu.matmul %171, %7, %cst_43 {dimension_numbers = #tpu.dot_dimension_numbers<[1], [0], [0], [1], [0, 0, 1, 1], [], []>} : vector<8x128xf32>, vector<128x384xf32>, vector<8x384xf32> -> vector<8x384xf32>
    %177 = arith.addf %176, %10 : vector<8x384xf32>
    %178 = vector.extract_strided_slice %175 {offsets = [0, 0], sizes = [8, 128], strides = [1, 1]} : vector<8x384xf32> to vector<8x128xf32>
    %179 = vector.extract_strided_slice %177 {offsets = [0, 0], sizes = [8, 128], strides = [1, 1]} : vector<8x384xf32> to vector<8x128xf32>
    %180 = arith.addf %178, %179 : vector<8x128xf32>
    %181 = arith.negf %180 : vector<8x128xf32>
    %182 = math.exp %181 : vector<8x128xf32>
    %cst_44 = arith.constant 1.000000e+00 : f32
    %183 = vector.broadcast %cst_44 : f32 to vector<8x128xf32>
    %184 = arith.addf %183, %182 : vector<8x128xf32>
    %185 = arith.divf %183, %184 : vector<8x128xf32>
    %186 = vector.extract_strided_slice %175 {offsets = [0, 128], sizes = [8, 128], strides = [1, 1]} : vector<8x384xf32> to vector<8x128xf32>
    %187 = vector.extract_strided_slice %177 {offsets = [0, 128], sizes = [8, 128], strides = [1, 1]} : vector<8x384xf32> to vector<8x128xf32>
    %188 = arith.addf %186, %187 : vector<8x128xf32>
    %189 = arith.negf %188 : vector<8x128xf32>
    %190 = math.exp %189 : vector<8x128xf32>
    %cst_45 = arith.constant 1.000000e+00 : f32
    %191 = vector.broadcast %cst_45 : f32 to vector<8x128xf32>
    %192 = arith.addf %191, %190 : vector<8x128xf32>
    %193 = arith.divf %191, %192 : vector<8x128xf32>
    %194 = vector.extract_strided_slice %175 {offsets = [0, 256], sizes = [8, 128], strides = [1, 1]} : vector<8x384xf32> to vector<8x128xf32>
    %195 = vector.extract_strided_slice %177 {offsets = [0, 256], sizes = [8, 128], strides = [1, 1]} : vector<8x384xf32> to vector<8x128xf32>
    %196 = arith.mulf %185, %195 : vector<8x128xf32>
    %197 = arith.addf %194, %196 : vector<8x128xf32>
    %198 = math.tanh %197 : vector<8x128xf32>
    %cst_46 = arith.constant 1.000000e+00 : f32
    %199 = vector.broadcast %cst_46 : f32 to vector<8x128xf32>
    %200 = arith.subf %199, %193 : vector<8x128xf32>
    %201 = arith.mulf %200, %198 : vector<8x128xf32>
    %202 = arith.mulf %193, %171 : vector<8x128xf32>
    %203 = arith.addf %201, %202 : vector<8x128xf32>
    %c6_i32 = arith.constant 6 : i32
    %c8_i32_47 = arith.constant 8 : i32
    %204 = arith.muli %c6_i32, %c8_i32_47 : i32
    %205 = tpu.assume_multiple %204, 8 : i32
    %206 = arith.index_cast %205 : i32 to index
    %c0_48 = arith.constant 0 : index
    %207 = vector.load %arg9[%206, %c0_48] : memref<64x384xf32, #tpu.memory_space<vmem>>, vector<8x384xf32>
    %cst_49 = arith.constant dense<0.000000e+00> : vector<8x384xf32>
    %208 = tpu.matmul %203, %7, %cst_49 {dimension_numbers = #tpu.dot_dimension_numbers<[1], [0], [0], [1], [0, 0, 1, 1], [], []>} : vector<8x128xf32>, vector<128x384xf32>, vector<8x384xf32> -> vector<8x384xf32>
    %209 = arith.addf %208, %10 : vector<8x384xf32>
    %210 = vector.extract_strided_slice %207 {offsets = [0, 0], sizes = [8, 128], strides = [1, 1]} : vector<8x384xf32> to vector<8x128xf32>
    %211 = vector.extract_strided_slice %209 {offsets = [0, 0], sizes = [8, 128], strides = [1, 1]} : vector<8x384xf32> to vector<8x128xf32>
    %212 = arith.addf %210, %211 : vector<8x128xf32>
    %213 = arith.negf %212 : vector<8x128xf32>
    %214 = math.exp %213 : vector<8x128xf32>
    %cst_50 = arith.constant 1.000000e+00 : f32
    %215 = vector.broadcast %cst_50 : f32 to vector<8x128xf32>
    %216 = arith.addf %215, %214 : vector<8x128xf32>
    %217 = arith.divf %215, %216 : vector<8x128xf32>
    %218 = vector.extract_strided_slice %207 {offsets = [0, 128], sizes = [8, 128], strides = [1, 1]} : vector<8x384xf32> to vector<8x128xf32>
    %219 = vector.extract_strided_slice %209 {offsets = [0, 128], sizes = [8, 128], strides = [1, 1]} : vector<8x384xf32> to vector<8x128xf32>
    %220 = arith.addf %218, %219 : vector<8x128xf32>
    %221 = arith.negf %220 : vector<8x128xf32>
    %222 = math.exp %221 : vector<8x128xf32>
    %cst_51 = arith.constant 1.000000e+00 : f32
    %223 = vector.broadcast %cst_51 : f32 to vector<8x128xf32>
    %224 = arith.addf %223, %222 : vector<8x128xf32>
    %225 = arith.divf %223, %224 : vector<8x128xf32>
    %226 = vector.extract_strided_slice %207 {offsets = [0, 256], sizes = [8, 128], strides = [1, 1]} : vector<8x384xf32> to vector<8x128xf32>
    %227 = vector.extract_strided_slice %209 {offsets = [0, 256], sizes = [8, 128], strides = [1, 1]} : vector<8x384xf32> to vector<8x128xf32>
    %228 = arith.mulf %217, %227 : vector<8x128xf32>
    %229 = arith.addf %226, %228 : vector<8x128xf32>
    %230 = math.tanh %229 : vector<8x128xf32>
    %cst_52 = arith.constant 1.000000e+00 : f32
    %231 = vector.broadcast %cst_52 : f32 to vector<8x128xf32>
    %232 = arith.subf %231, %225 : vector<8x128xf32>
    %233 = arith.mulf %232, %230 : vector<8x128xf32>
    %234 = arith.mulf %225, %203 : vector<8x128xf32>
    %235 = arith.addf %233, %234 : vector<8x128xf32>
    %c7_i32 = arith.constant 7 : i32
    %c8_i32_53 = arith.constant 8 : i32
    %236 = arith.muli %c7_i32, %c8_i32_53 : i32
    %237 = tpu.assume_multiple %236, 8 : i32
    %238 = arith.index_cast %237 : i32 to index
    %c0_54 = arith.constant 0 : index
    %239 = vector.load %arg9[%238, %c0_54] : memref<64x384xf32, #tpu.memory_space<vmem>>, vector<8x384xf32>
    %cst_55 = arith.constant dense<0.000000e+00> : vector<8x384xf32>
    %240 = tpu.matmul %235, %7, %cst_55 {dimension_numbers = #tpu.dot_dimension_numbers<[1], [0], [0], [1], [0, 0, 1, 1], [], []>} : vector<8x128xf32>, vector<128x384xf32>, vector<8x384xf32> -> vector<8x384xf32>
    %241 = arith.addf %240, %10 : vector<8x384xf32>
    %242 = vector.extract_strided_slice %239 {offsets = [0, 0], sizes = [8, 128], strides = [1, 1]} : vector<8x384xf32> to vector<8x128xf32>
    %243 = vector.extract_strided_slice %241 {offsets = [0, 0], sizes = [8, 128], strides = [1, 1]} : vector<8x384xf32> to vector<8x128xf32>
    %244 = arith.addf %242, %243 : vector<8x128xf32>
    %245 = arith.negf %244 : vector<8x128xf32>
    %246 = math.exp %245 : vector<8x128xf32>
    %cst_56 = arith.constant 1.000000e+00 : f32
    %247 = vector.broadcast %cst_56 : f32 to vector<8x128xf32>
    %248 = arith.addf %247, %246 : vector<8x128xf32>
    %249 = arith.divf %247, %248 : vector<8x128xf32>
    %250 = vector.extract_strided_slice %239 {offsets = [0, 128], sizes = [8, 128], strides = [1, 1]} : vector<8x384xf32> to vector<8x128xf32>
    %251 = vector.extract_strided_slice %241 {offsets = [0, 128], sizes = [8, 128], strides = [1, 1]} : vector<8x384xf32> to vector<8x128xf32>
    %252 = arith.addf %250, %251 : vector<8x128xf32>
    %253 = arith.negf %252 : vector<8x128xf32>
    %254 = math.exp %253 : vector<8x128xf32>
    %cst_57 = arith.constant 1.000000e+00 : f32
    %255 = vector.broadcast %cst_57 : f32 to vector<8x128xf32>
    %256 = arith.addf %255, %254 : vector<8x128xf32>
    %257 = arith.divf %255, %256 : vector<8x128xf32>
    %258 = vector.extract_strided_slice %239 {offsets = [0, 256], sizes = [8, 128], strides = [1, 1]} : vector<8x384xf32> to vector<8x128xf32>
    %259 = vector.extract_strided_slice %241 {offsets = [0, 256], sizes = [8, 128], strides = [1, 1]} : vector<8x384xf32> to vector<8x128xf32>
    %260 = arith.mulf %249, %259 : vector<8x128xf32>
    %261 = arith.addf %258, %260 : vector<8x128xf32>
    %262 = math.tanh %261 : vector<8x128xf32>
    %cst_58 = arith.constant 1.000000e+00 : f32
    %263 = vector.broadcast %cst_58 : f32 to vector<8x128xf32>
    %264 = arith.subf %263, %257 : vector<8x128xf32>
    %265 = arith.mulf %264, %262 : vector<8x128xf32>
    %266 = arith.mulf %257, %235 : vector<8x128xf32>
    %267 = arith.addf %265, %266 : vector<8x128xf32>
    %c8_i32_59 = arith.constant 8 : i32
    %cst_60 = arith.constant 0.000000e+00 : f32
    %268 = vector.broadcast %cst_60 : f32 to vector<8x128xf32>
    %269 = arith.maximumf %267, %268 : vector<8x128xf32>
    %c0_61 = arith.constant 0 : index
    %c0_62 = arith.constant 0 : index
    %270 = vector.load %arg6[%c0_61, %c0_62] : memref<128x1xf32, #tpu.memory_space<vmem>>, vector<128x1xf32>
    %cst_63 = arith.constant dense<0.000000e+00> : vector<8x1xf32>
    %271 = tpu.matmul %269, %270, %cst_63 {dimension_numbers = #tpu.dot_dimension_numbers<[1], [0], [0], [1], [0, 0, 1, 1], [], []>} : vector<8x128xf32>, vector<128x1xf32>, vector<8x1xf32> -> vector<8x1xf32>
    %c0_64 = arith.constant 0 : index
    %c0_65 = arith.constant 0 : index
    %272 = vector.load %arg7[%c0_64, %c0_65] : memref<1x1xf32, #tpu.memory_space<vmem>>, vector<1x1xf32>
    %273 = vector.broadcast %272 : vector<1x1xf32> to vector<8x1xf32>
    %274 = arith.addf %271, %273 : vector<8x1xf32>
    %c0_66 = arith.constant 0 : index
    %c0_67 = arith.constant 0 : index
    %275 = vector.load %arg8[%c0_66, %c0_67] : memref<8x1xf32, #tpu.memory_space<vmem>>, vector<8x1xf32>
    tpu.vector_store %arg8[%c0_66, %c0_67], %274 {strides = array<i32>} : memref<8x1xf32, #tpu.memory_space<vmem>>, vector<8x1xf32>,
    return
  }
  func.func @transform_0(%arg0: i32) -> (i32, i32) {
    %c0_i32 = arith.constant 0 : i32
    %c0_i32_0 = arith.constant 0 : i32
    %c0_i32_1 = arith.constant 0 : i32
    return %c0_i32, %c0_i32_0 : i32, i32
  }
  func.func @transform_1(%arg0: i32) -> (i32, i32) {
    %c0_i32 = arith.constant 0 : i32
    %c0_i32_0 = arith.constant 0 : i32
    %c0_i32_1 = arith.constant 0 : i32
    return %c0_i32, %c0_i32_0 : i32, i32
  }
  func.func @transform_2(%arg0: i32) -> (i32, i32) {
    %c0_i32 = arith.constant 0 : i32
    %c0_i32_0 = arith.constant 0 : i32
    %c0_i32_1 = arith.constant 0 : i32
    return %c0_i32, %c0_i32_0 : i32, i32
  }
  func.func @transform_3(%arg0: i32) -> (i32, i32) {
    %c0_i32 = arith.constant 0 : i32
    %c0_i32_0 = arith.constant 0 : i32
    %c0_i32_1 = arith.constant 0 : i32
    return %c0_i32, %c0_i32_0 : i32, i32
  }
  func.func @transform_4(%arg0: i32) -> (i32, i32) {
    %c0_i32 = arith.constant 0 : i32
    %c0_i32_0 = arith.constant 0 : i32
    %c0_i32_1 = arith.constant 0 : i32
    return %c0_i32, %c0_i32_0 : i32, i32
  }
  func.func @transform_5(%arg0: i32) -> (i32, i32) {
    %c0_i32 = arith.constant 0 : i32
    %c0_i32_0 = arith.constant 0 : i32
    %c0_i32_1 = arith.constant 0 : i32
    return %c0_i32, %c0_i32_0 : i32, i32
  }
  func.func @transform_6(%arg0: i32) -> (i32, i32) {
    %c0_i32 = arith.constant 0 : i32
    %c0_i32_0 = arith.constant 0 : i32
    %c0_i32_1 = arith.constant 0 : i32
    return %c0_i32, %c0_i32_0 : i32, i32
  }
  func.func @transform_7(%arg0: i32) -> (i32, i32) {
    %c0_i32 = arith.constant 0 : i32
    %c0_i32_0 = arith.constant 0 : i32
    %c0_i32_1 = arith.constant 0 : i32
    return %c0_i32, %c0_i32_0 : i32, i32
  }
}

</mosaic_0001>

<llo_original>
// kernel: tpu_custom_call.1
$region0: #{tpu_custom_call.1}
  #allocation0 [shape = 'u32[]', space=smem, size = 0x4, offset = 0x4, fixed_abs, tag = 'smem constant byte address 0x4 - core index']
  #allocation1 [shape = 'u32[144,128]{1,0:T(1,128)}', space=vmem, size = 0x12000, scoped, tag = 'internal scratch']
  #allocation2 [shape = 'f32[64,384]{1,0:T(8,128)}', space=vmem, size = 0x18000, scoped, tag = 'scratch operand']
  #allocation3 [shape = 'f32[1,1]{1,0:T(1,128)S(1)}', space=vmem, size = 0x200, scoped, tag = 'scoped memory for tpu_custom_call.1']
  %s0 = inlined_call_operand.vmem [shape: f32[64,4], index: 0, kind: input, shape index: {}]
  %s1 = inlined_call_operand.vmem [shape: f32[4,384], index: 1, kind: input, shape index: {}]
  %s2 = inlined_call_operand.hbm [shape: f32[128,384], index: 2, kind: input, shape index: {}]
  %s3 = inlined_call_operand.vmem [shape: f32[1,384], index: 3, kind: input, shape index: {}]
  %s4 = inlined_call_operand.vmem [shape: f32[1,384], index: 4, kind: input, shape index: {}]
  %s5 = inlined_call_operand.vmem [shape: f32[128,1], index: 5, kind: input, shape index: {}]
  %s6 = inlined_call_operand.<no memory space> [shape: f32[1,1], index: 6, kind: input, shape index: {}]
  %s7 = inlined_call_operand.vmem [shape: f32[8,1], index: 7, kind: output, shape index: {}]
  %s8 = sld [smem:[#allocation0]]
  $region42: #{tpu_custom_call.1} parent=0
    _
  %s10 = ssub.s32 1, %s8
  %s11 = scalar_select 0, %s10, %s8
  %v12 = vstv %s6
  %13 = vst [vmem:[#allocation3] sm:$0x1] %v12
  $region1: #{tpu_custom_call.1} parent=0
    #allocation4 [shape = 'u8[196608]{0}', space=vmem, size = 0x30000, scoped, tag = 'input window, operand 2, single buffered']
    #allocation5 [shape = 's32[1]{0}', space=sflag, size = 0x4, scoped, tag = 'scoped memory for tpu_custom_call.1']
    %14 = vsyncpa [#allocation5], 0
    // Predicated region
    $region2: #{tpu_custom_call.1} parent=1 // pred_check
      _
    $region3: #{tpu_custom_call.1} parent=1 // pred_check_branch
      %16 = sbr.rel (0) target = $region5
    $region4: #{tpu_custom_call.1} parent=1 // pred_region
      _
    $region5: #{tpu_custom_call.1} parent=1 // pred_fallthru
      _
    // Predicated region
    $region6: #{tpu_custom_call.1} parent=1 // pred_check
      _
    $region7: #{tpu_custom_call.1} parent=1 // pred_check_branch
      %18 = sbr.rel (0) target = $region9
    $region8: #{tpu_custom_call.1} parent=1 // pred_region
      _
    $region9: #{tpu_custom_call.1} parent=1 // pred_fallthru
      _
    // Predicated region
    $region10: #{tpu_custom_call.1} parent=1 // pred_check
      _
    $region11: #{tpu_custom_call.1} parent=1 // pred_check_branch
      %20 = sbr.rel (0) target = $region13
    $region12: #{tpu_custom_call.1} parent=1 // pred_region
      %s22 = ssub.s32 6144, 6144
      %23 = vsyncadd [#allocation5], %s22
      %s24 = sshll.u32 [#allocation4], 4
      %s25 = int_to_ptr.vmem [resolvable:$true] %s24
      %30 = dma.hbm_to_vmem [thread:$0]  %s2, 6144, %s25, [#allocation5], 384, 384, 24
    $region13: #{tpu_custom_call.1} parent=1 // pred_fallthru
      _
    // Predicated region
    $region14: #{tpu_custom_call.1} parent=1 // pred_check
      _
    $region15: #{tpu_custom_call.1} parent=1 // pred_check_branch
      %32 = sbr.rel (0) target = $region17
    $region16: #{tpu_custom_call.1} parent=1 // pred_region
      _
    $region17: #{tpu_custom_call.1} parent=1 // pred_fallthru
      _
    // Predicated region
    $region18: #{tpu_custom_call.1} parent=1 // pred_check
      _
    $region19: #{tpu_custom_call.1} parent=1 // pred_check_branch
      %34 = sbr.rel (0) target = $region21
    $region20: #{tpu_custom_call.1} parent=1 // pred_region
      _
    $region21: #{tpu_custom_call.1} parent=1 // pred_fallthru
      _
    // Predicated region
    $region22: #{tpu_custom_call.1} parent=1 // pred_check
      _
    $region23: #{tpu_custom_call.1} parent=1 // pred_check_branch
      %36 = sbr.rel (0) target = $region25
    $region24: #{tpu_custom_call.1} parent=1 // pred_region
      _
    $region25: #{tpu_custom_call.1} parent=1 // pred_fallthru
      _
    // Predicated region
    $region26: #{tpu_custom_call.1} parent=1 // pred_check
      _
    $region27: #{tpu_custom_call.1} parent=1 // pred_check_branch
      %38 = sbr.rel (0) target = $region29
    $region28: #{tpu_custom_call.1} parent=1 // pred_region
      _
    $region29: #{tpu_custom_call.1} parent=1 // pred_fallthru
      _
    // Predicated region
    $region30: #{tpu_custom_call.1} parent=1 // pred_check
      _
    $region31: #{tpu_custom_call.1} parent=1 // pred_check_branch
      %40 = sbr.rel (0) target = $region33
    $region32: #{tpu_custom_call.1} parent=1 // pred_region
      %41 = dma.done [#allocation5], 6144
    $region33: #{tpu_custom_call.1} parent=1 // pred_fallthru
      _
    %v42 = vld [vmem:[%s0] sm:$0xff]
    %v43 = vld [vmem:[%s0 + $0x8] sm:$0xff]
    %v44 = vld [vmem:[%s0 + $0x10] sm:$0xff]
    %v45 = vld [vmem:[%s0 + $0x18] sm:$0xff]
    %v46 = vld [vmem:[%s0 + $0x20] sm:$0xff]
    %v47 = vld [vmem:[%s0 + $0x28] sm:$0xff]
    %v48 = vld [vmem:[%s0 + $0x30] sm:$0xff]
    %v49 = vld [vmem:[%s0 + $0x38] sm:$0xff]
    %v50 = vld [vmem:[%s1] sm:$0xff]
    %v51 = vld [vmem:[%s1 + $0x8] sm:$0xf]
    %v52 = vld [vmem:[%s3] sm:$0x7]
    %v54 = vlaneseq
    %v55 = vshrl.u32 %v54, 7
    %v56 = vsub.s32 0, %v55
    %v57 = vrot.slane %v52, %v56
    %v58 = vlaneseq
    %v59 = vshrl.u32 %v58, 7
    %v60 = vsub.s32 1, %v59
    %v61 = vrot.slane %v52, %v60
    %v62 = vlaneseq
    %v63 = vshrl.u32 %v62, 7
    %v64 = vsub.s32 2, %v63
    %v65 = vrot.slane %v52, %v64
    %v71 = vcombine.high %v50, %v50
    %vm72 = vcmask 31744
    %v74 = vsel %vm72, %v42, 0
    %v77 = vsel %vm72, %v43, 0
    %v80 = vsel %vm72, %v44, 0
    %v83 = vsel %vm72, %v45, 0
    %v86 = vsel %vm72, %v46, 0
    %v89 = vsel %vm72, %v47, 0
    %v92 = vsel %vm72, %v48, 0
    %v95 = vsel %vm72, %v49, 0
    %vm97 = vcmask 1043456
    %v98 = vsel %vm97, %v50, 0
    %v100 = vsel %vm97, %v71, 0
    %v102 = vsel %vm97, %v51, 0
    %104 = vmatprep.subr.mxu0 0.0
    %105 = vmatpush1.msra.mxu0 0.0
    %106 = vmatprep.subr.mxu0 0.0
    %107 = vmatpush1.msra.mxu0 0.0
    %108 = vmatprep.subr.mxu0 0.0
    %109 = vmatpush1.msra.mxu0 0.0
    %110 = vmatprep.subr.mxu0 0.0
    %111 = vmatpush1.msra.mxu0 0.0
    %112 = vmatprep.subr.mxu0 0.0
    %113 = vmatpush1.msra.mxu0 0.0
    %114 = vmatprep.subr.mxu0 0.0
    %115 = vmatpush1.msra.mxu0 0.0
    %116 = vmatprep.subr.mxu0 0.0
    %117 = vmatpush1.msra.mxu0 0.0
    %118 = vmatprep.subr.mxu0 0.0
    %119 = vmatpush1.msra.mxu0 0.0
    %120 = vmatprep.subr.mxu0 0.0
    %121 = vmatpush1.msra.mxu0 0.0
    %122 = vmatprep.subr.mxu0 0.0
    %123 = vmatpush1.msra.mxu0 0.0
    %124 = vmatprep.subr.mxu0 0.0
    %125 = vmatpush1.msra.mxu0 0.0
    %126 = vmatprep.subr.mxu0 0.0
    %127 = vmatpush1.msra.mxu0 0.0
    %128 = vmatprep.subr.mxu0 0.0
    %129 = vmatpush1.msra.mxu0 0.0
    %130 = vmatprep.subr.mxu0 0.0
    %131 = vmatpush1.msra.mxu0 0.0
    %132 = vmatprep.subr.mxu0 0.0
    %133 = vmatpush1.msra.mxu0 0.0
    %134 = vmatprep.subr.mxu0 %v100
    %135 = vmatpush1.msra.mxu0 %v98
    %136 = vmatprep.subr.mxu0 0.0
    %137 = vmatpush2.msra.mxu0 0.0
    %138 = vmatprep.subr.mxu0 0.0
    %139 = vmatpush2.msra.mxu0 0.0
    %140 = vmatprep.subr.mxu0 0.0
    %141 = vmatpush2.msra.mxu0 0.0
    %142 = vmatprep.subr.mxu0 0.0
    %143 = vmatpush2.msra.mxu0 0.0
    %144 = vmatprep.subr.mxu0 0.0
    %145 = vmatpush2.msra.mxu0 0.0
    %146 = vmatprep.subr.mxu0 0.0
    %147 = vmatpush2.msra.mxu0 0.0
    %148 = vmatprep.subr.mxu0 0.0
    %149 = vmatpush2.msra.mxu0 0.0
    %150 = vmatprep.subr.mxu0 0.0
    %151 = vmatpush2.msra.mxu0 0.0
    %152 = vmatprep.subr.mxu0 0.0
    %153 = vmatpush2.msra.mxu0 0.0
    %154 = vmatprep.subr.mxu0 0.0
    %155 = vmatpush2.msra.mxu0 0.0
    %156 = vmatprep.subr.mxu0 0.0
    %157 = vmatpush2.msra.mxu0 0.0
    %158 = vmatprep.subr.mxu0 0.0
    %159 = vmatpush2.msra.mxu0 0.0
    %160 = vmatprep.subr.mxu0 0.0
    %161 = vmatpush2.msra.mxu0 0.0
    %162 = vmatprep.subr.mxu0 0.0
    %163 = vmatpush2.msra.mxu0 0.0
    %164 = vmatprep.subr.mxu0 0.0
    %165 = vmatpush2.msra.mxu0 0.0
    %166 = vmatprep.subr.mxu0 0.0
    %167 = vmatpush2.msra.mxu0 0.0
    %168 = vmatprep.mubr.f32.mxu0 0.0
    %169 = vmatmul.mubr.f32.gmra.mxu0 %v74
    %v170 = vpop.f32.mrf.mxu0
    %v171 = vadd.f32 %v57, %v170
    %v172 = vpop.f32.mrf.mxu0
    %v173 = vadd.f32 %v61, %v172
    %174 = vmatprep.mubr.f32.mxu0 0.0
    %175 = vmatmul.mubr.f32.gmra.mxu0 %v77
    %v176 = vpop.f32.mrf.mxu0
    %v177 = vadd.f32 %v57, %v176
    %v178 = vpop.f32.mrf.mxu0
    %v179 = vadd.f32 %v61, %v178
    %180 = vmatprep.mubr.f32.mxu0 0.0
    %181 = vmatmul.mubr.f32.gmra.mxu0 %v80
    %v182 = vpop.f32.mrf.mxu0
    %v183 = vadd.f32 %v57, %v182
    %v184 = vpop.f32.mrf.mxu0
    %v185 = vadd.f32 %v61, %v184
    %186 = vmatprep.mubr.f32.mxu0 0.0
    %187 = vmatmul.mubr.f32.gmra.mxu0 %v83
    %v188 = vpop.f32.mrf.mxu0
    %v189 = vadd.f32 %v57, %v188
    %v190 = vpop.f32.mrf.mxu0
    %v191 = vadd.f32 %v61, %v190
    %192 = vmatprep.mubr.f32.mxu0 0.0
    %193 = vmatmul.mubr.f32.gmra.mxu0 %v86
    %v194 = vpop.f32.mrf.mxu0
    %v195 = vadd.f32 %v57, %v194
    %v196 = vpop.f32.mrf.mxu0
    %v197 = vadd.f32 %v61, %v196
    %198 = vmatprep.mubr.f32.mxu0 0.0
    %199 = vmatmul.mubr.f32.gmra.mxu0 %v89
    %v200 = vpop.f32.mrf.mxu0
    %v201 = vadd.f32 %v57, %v200
    %v202 = vpop.f32.mrf.mxu0
    %v203 = vadd.f32 %v61, %v202
    %204 = vmatprep.mubr.f32.mxu0 0.0
    %205 = vmatmul.mubr.f32.gmra.mxu0 %v92
    %v206 = vpop.f32.mrf.mxu0
    %v207 = vadd.f32 %v57, %v206
    %v208 = vpop.f32.mrf.mxu0
    %v209 = vadd.f32 %v61, %v208
    %210 = vmatprep.mubr.f32.mxu0 0.0
    %211 = vmatmul.mubr.f32.gmra.mxu0 %v95
    %v212 = vpop.f32.mrf.mxu0
    %v213 = vadd.f32 %v57, %v212
    %v214 = vpop.f32.mrf.mxu0
    %v215 = vadd.f32 %v61, %v214
    %216 = vdwg.mxu0
    %217 = vmatprep.subr.mxu0 0.0
    %218 = vmatpush1.msra.mxu0 0.0
    %219 = vmatprep.subr.mxu0 0.0
    %220 = vmatpush1.msra.mxu0 0.0
    %221 = vmatprep.subr.mxu0 0.0
    %222 = vmatpush1.msra.mxu0 0.0
    %223 = vmatprep.subr.mxu0 0.0
    %224 = vmatpush1.msra.mxu0 0.0
    %225 = vmatprep.subr.mxu0 0.0
    %226 = vmatpush1.msra.mxu0 0.0
    %227 = vmatprep.subr.mxu0 0.0
    %228 = vmatpush1.msra.mxu0 0.0
    %229 = vmatprep.subr.mxu0 0.0
    %230 = vmatpush1.msra.mxu0 0.0
    %231 = vmatprep.subr.mxu0 0.0
    %232 = vmatpush1.msra.mxu0 0.0
    %233 = vmatprep.subr.mxu0 0.0
    %234 = vmatpush1.msra.mxu0 0.0
    %235 = vmatprep.subr.mxu0 0.0
    %236 = vmatpush1.msra.mxu0 0.0
    %237 = vmatprep.subr.mxu0 0.0
    %238 = vmatpush1.msra.mxu0 0.0
    %239 = vmatprep.subr.mxu0 0.0
    %240 = vmatpush1.msra.mxu0 0.0
    %241 = vmatprep.subr.mxu0 0.0
    %242 = vmatpush1.msra.mxu0 0.0
    %243 = vmatprep.subr.mxu0 0.0
    %244 = vmatpush1.msra.mxu0 0.0
    %245 = vmatprep.subr.mxu0 0.0
    %246 = vmatpush1.msra.mxu0 0.0
    %247 = vmatprep.subr.mxu0 0.0
    %248 = vmatpush1.msra.mxu0 %v102
    %249 = vmatprep.subr.mxu0 0.0
    %250 = vmatpush2.msra.mxu0 0.0
    %251 = vmatprep.subr.mxu0 0.0
    %252 = vmatpush2.msra.mxu0 0.0
    %253 = vmatprep.subr.mxu0 0.0
    %254 = vmatpush2.msra.mxu0 0.0
    %255 = vmatprep.subr.mxu0 0.0
    %256 = vmatpush2.msra.mxu0 0.0
    %257 = vmatprep.subr.mxu0 0.0
    %258 = vmatpush2.msra.mxu0 0.0
    %259 = vmatprep.subr.mxu0 0.0
    %260 = vmatpush2.msra.mxu0 0.0
    %261 = vmatprep.subr.mxu0 0.0
    %262 = vmatpush2.msra.mxu0 0.0
    %263 = vmatprep.subr.mxu0 0.0
    %264 = vmatpush2.msra.mxu0 0.0
    %265 = vmatprep.subr.mxu0 0.0
    %266 = vmatpush2.msra.mxu0 0.0
    %267 = vmatprep.subr.mxu0 0.0
    %268 = vmatpush2.msra.mxu0 0.0
    %269 = vmatprep.subr.mxu0 0.0
    %270 = vmatpush2.msra.mxu0 0.0
    %271 = vmatprep.subr.mxu0 0.0
    %272 = vmatpush2.msra.mxu0 0.0
    %273 = vmatprep.subr.mxu0 0.0
    %274 = vmatpush2.msra.mxu0 0.0
    %275 = vmatprep.subr.mxu0 0.0
    %276 = vmatpush2.msra.mxu0 0.0
    %277 = vmatprep.subr.mxu0 0.0
    %278 = vmatpush2.msra.mxu0 0.0
    %279 = vmatprep.subr.mxu0 0.0
    %280 = vmatpush2.msra.mxu0 0.0
    %281 = vmatprep.mubr.f32.mxu0 0.0
    %282 = vmatmul.mubr.f32.gmra.mxu0 %v74
    %v283 = vpop.f32.mrf.mxu0
    %v284 = vadd.f32 %v65, %v283
    %v285 = vpop.f32.mrf.mxu0
    %286 = vmatprep.mubr.f32.mxu0 0.0
    %287 = vmatmul.mubr.f32.gmra.mxu0 %v77
    %v288 = vpop.f32.mrf.mxu0
    %v289 = vadd.f32 %v65, %v288
    %v290 = vpop.f32.mrf.mxu0
    %291 = vmatprep.mubr.f32.mxu0 0.0
    %292 = vmatmul.mubr.f32.gmra.mxu0 %v80
    %v293 = vpop.f32.mrf.mxu0
    %v294 = vadd.f32 %v65, %v293
    %v295 = vpop.f32.mrf.mxu0
    %296 = vmatprep.mubr.f32.mxu0 0.0
    %297 = vmatmul.mubr.f32.gmra.mxu0 %v83
    %v298 = vpop.f32.mrf.mxu0
    %v299 = vadd.f32 %v65, %v298
    %v300 = vpop.f32.mrf.mxu0
    %301 = vmatprep.mubr.f32.mxu0 0.0
    %302 = vmatmul.mubr.f32.gmra.mxu0 %v86
    %v303 = vpop.f32.mrf.mxu0
    %v304 = vadd.f32 %v65, %v303
    %v305 = vpop.f32.mrf.mxu0
    %306 = vmatprep.mubr.f32.mxu0 0.0
    %307 = vmatmul.mubr.f32.gmra.mxu0 %v89
    %v308 = vpop.f32.mrf.mxu0
    %v309 = vadd.f32 %v65, %v308
    %v310 = vpop.f32.mrf.mxu0
    %311 = vmatprep.mubr.f32.mxu0 0.0
    %312 = vmatmul.mubr.f32.gmra.mxu0 %v92
    %v313 = vpop.f32.mrf.mxu0
    %v314 = vadd.f32 %v65, %v313
    %v315 = vpop.f32.mrf.mxu0
    %316 = vmatprep.mubr.f32.mxu0 0.0
    %317 = vmatmul.mubr.f32.gmra.mxu0 %v95
    %v318 = vpop.f32.mrf.mxu0
    %v319 = vadd.f32 %v65, %v318
    %v320 = vpop.f32.mrf.mxu0
    %321 = vdwg.mxu0
    %322 = vst [vmem:[#allocation2] sm:$0xff] %v171
    %323 = vst [vmem:[#allocation2 + $0x8] sm:$0xff] %v173
    %324 = vst [vmem:[#allocation2 + $0x10] sm:$0xff] %v284
    %325 = vst [vmem:[#allocation2 + $0x18] sm:$0xff] %v177
    %326 = vst [vmem:[#allocation2 + $0x20] sm:$0xff] %v179
    %327 = vst [vmem:[#allocation2 + $0x28] sm:$0xff] %v289
    %328 = vst [vmem:[#allocation2 + $0x30] sm:$0xff] %v183
    %329 = vst [vmem:[#allocation2 + $0x38] sm:$0xff] %v185
    %330 = vst [vmem:[#allocation2 + $0x40] sm:$0xff] %v294
    %331 = vst [vmem:[#allocation2 + $0x48] sm:$0xff] %v189
    %332 = vst [vmem:[#allocation2 + $0x50] sm:$0xff] %v191
    %333 = vst [vmem:[#allocation2 + $0x58] sm:$0xff] %v299
    %334 = vst [vmem:[#allocation2 + $0x60] sm:$0xff] %v195
    %335 = vst [vmem:[#allocation2 + $0x68] sm:$0xff] %v197
    %336 = vst [vmem:[#allocation2 + $0x70] sm:$0xff] %v304
    %337 = vst [vmem:[#allocation2 + $0x78] sm:$0xff] %v201
    %338 = vst [vmem:[#allocation2 + $0x80] sm:$0xff] %v203
    %339 = vst [vmem:[#allocation2 + $0x88] sm:$0xff] %v309
    %340 = vst [vmem:[#allocation2 + $0x90] sm:$0xff] %v207
    %341 = vst [vmem:[#allocation2 + $0x98] sm:$0xff] %v209
    %342 = vst [vmem:[#allocation2 + $0xa0] sm:$0xff] %v314
    %343 = vst [vmem:[#allocation2 + $0xa8] sm:$0xff] %v213
    %344 = vst [vmem:[#allocation2 + $0xb0] sm:$0xff] %v215
    %345 = vst [vmem:[#allocation2 + $0xb8] sm:$0xff] %v319
    %v346 = vld [vmem:[#allocation4] sm:$0xff]
    %v347 = vld [vmem:[#allocation4 + $0x8] sm:$0xff]
    %v348 = vld [vmem:[#allocation4 + $0x10] sm:$0xff]
    %v349 = vld [vmem:[#allocation4 + $0x18] sm:$0xff]
    %v350 = vld [vmem:[#allocation4 + $0x20] sm:$0xff]
    %v351 = vld [vmem:[#allocation4 + $0x28] sm:$0xff]
    %v352 = vld [vmem:[#allocation4 + $0x30] sm:$0xff]
    %v353 = vld [vmem:[#allocation4 + $0x38] sm:$0xff]
    %v354 = vld [vmem:[#allocation4 + $0x40] sm:$0xff]
    %v355 = vld [vmem:[#allocation4 + $0x48] sm:$0xff]
    %v356 = vld [vmem:[#allocation4 + $0x50] sm:$0xff]
    %v357 = vld [vmem:[#allocation4 + $0x58] sm:$0xff]
    %v358 = vld [vmem:[#allocation4 + $0x60] sm:$0xff]
    %v359 = vld [vmem:[#allocation4 + $0x68] sm:$0xff]
    %v360 = vld [vmem:[#allocation4 + $0x70] sm:$0xff]
    %v361 = vld [vmem:[#allocation4 + $0x78] sm:$0xff]
    %v362 = vld [vmem:[#allocation4 + $0x80] sm:$0xff]
    %v363 = vld [vmem:[#allocation4 + $0x88] sm:$0xff]
    %v364 = vld [vmem:[#allocation4 + $0x90] sm:$0xff]
    %v365 = vld [vmem:[#allocation4 + $0x98] sm:$0xff]
    %v366 = vld [vmem:[#allocation4 + $0xa0] sm:$0xff]
    %v367 = vld [vmem:[#allocation4 + $0xa8] sm:$0xff]
    %v368 = vld [vmem:[#allocation4 + $0xb0] sm:$0xff]
    %v369 = vld [vmem:[#allocation4 + $0xb8] sm:$0xff]
    %v370 = vld [vmem:[#allocation4 + $0xc0] sm:$0xff]
    %v371 = vld [vmem:[#allocation4 + $0xc8] sm:$0xff]
    %v372 = vld [vmem:[#allocation4 + $0xd0] sm:$0xff]
    %v373 = vld [vmem:[#allocation4 + $0xd8] sm:$0xff]
    %v374 = vld [vmem:[#allocation4 + $0xe0] sm:$0xff]
    %v375 = vld [vmem:[#allocation4 + $0xe8] sm:$0xff]
    %v376 = vld [vmem:[#allocation4 + $0xf0] sm:$0xff]
    %v377 = vld [vmem:[#allocation4 + $0xf8] sm:$0xff]
    %v378 = vld [vmem:[#allocation4 + $0x100] sm:$0xff]
    %v379 = vld [vmem:[#allocation4 + $0x108] sm:$0xff]
    %v380 = vld [vmem:[#allocation4 + $0x110] sm:$0xff]
    %v381 = vld [vmem:[#allocation4 + $0x118] sm:$0xff]
    %v382 = vld [vmem:[#allocation4 + $0x120] sm:$0xff]
    %v383 = vld [vmem:[#allocation4 + $0x128] sm:$0xff]
    %v384 = vld [vmem:[#allocation4 + $0x130] sm:$0xff]
    %v385 = vld [vmem:[#allocation4 + $0x138] sm:$0xff]
    %v386 = vld [vmem:[#allocation4 + $0x140] sm:$0xff]
    %v387 = vld [vmem:[#allocation4 + $0x148] sm:$0xff]
    %v388 = vld [vmem:[#allocation4 + $0x150] sm:$0xff]
    %v389 = vld [vmem:[#allocation4 + $0x158] sm:$0xff]
    %v390 = vld [vmem:[#allocation4 + $0x160] sm:$0xff]
    %v391 = vld [vmem:[#allocation4 + $0x168] sm:$0xff]
    %v392 = vld [vmem:[#allocation4 + $0x170] sm:$0xff]
    %v393 = vld [vmem:[#allocation4 + $0x178] sm:$0xff]
    %v394 = vld [vmem:[%s4] sm:$0x7]
    %v396 = vlaneseq
    %v397 = vshrl.u32 %v396, 7
    %v398 = vsub.s32 0, %v397
    %v399 = vrot.slane %v394, %v398
    %v400 = vlaneseq
    %v401 = vshrl.u32 %v400, 7
    %v402 = vsub.s32 1, %v401
    %v403 = vrot.slane %v394, %v402
    %v404 = vlaneseq
    %v405 = vshrl.u32 %v404, 7
    %v406 = vsub.s32 2, %v405
    %v407 = vrot.slane %v394, %v406
    %s411 = smul.u32 0, 3
    %s412 = smul.addr %s411, 8
    %s413 = scalar_lea.vmem [#allocation2], %s412
    %v414 = vld [vmem:[%s413] sm:$0xff]
    %v415 = vld [vmem:[%s413 + $0x8] sm:$0xff]
    %v416 = vld [vmem:[%s413 + $0x10] sm:$0xff]
    %417 = vmatprep.subr.mxu0 %v392
    %418 = vmatpush1.msra.mxu0 %v391
    %419 = vmatprep.subr.mxu0 %v389
    %420 = vmatpush1.msra.mxu0 %v388
    %421 = vmatprep.subr.mxu0 %v386
    %422 = vmatpush1.msra.mxu0 %v385
    %423 = vmatprep.subr.mxu0 %v383
    %424 = vmatpush1.msra.mxu0 %v382
    %425 = vmatprep.subr.mxu0 %v380
    %426 = vmatpush1.msra.mxu0 %v379
    %427 = vmatprep.subr.mxu0 %v377
    %428 = vmatpush1.msra.mxu0 %v376
    %429 = vmatprep.subr.mxu0 %v374
    %430 = vmatpush1.msra.mxu0 %v373
    %431 = vmatprep.subr.mxu0 %v371
    %432 = vmatpush1.msra.mxu0 %v370
    %433 = vmatprep.subr.mxu0 %v368
    %434 = vmatpush1.msra.mxu0 %v367
    %435 = vmatprep.subr.mxu0 %v365
    %436 = vmatpush1.msra.mxu0 %v364
    %437 = vmatprep.subr.mxu0 %v362
    %438 = vmatpush1.msra.mxu0 %v361
    %439 = vmatprep.subr.mxu0 %v359
    %440 = vmatpush1.msra.mxu0 %v358
    %441 = vmatprep.subr.mxu0 %v356
    %442 = vmatpush1.msra.mxu0 %v355
    %443 = vmatprep.subr.mxu0 %v353
    %444 = vmatpush1.msra.mxu0 %v352
    %445 = vmatprep.subr.mxu0 %v350
    %446 = vmatpush1.msra.mxu0 %v349
    %447 = vmatprep.subr.mxu0 %v347
    %448 = vmatpush1.msra.mxu0 %v346
    %449 = vmatprep.subr.mxu0 0.0
    %450 = vmatpush2.msra.mxu0 0.0
    %451 = vmatprep.subr.mxu0 0.0
    %452 = vmatpush2.msra.mxu0 0.0
    %453 = vmatprep.subr.mxu0 0.0
    %454 = vmatpush2.msra.mxu0 0.0
    %455 = vmatprep.subr.mxu0 0.0
    %456 = vmatpush2.msra.mxu0 0.0
    %457 = vmatprep.subr.mxu0 0.0
    %458 = vmatpush2.msra.mxu0 0.0
    %459 = vmatprep.subr.mxu0 0.0
    %460 = vmatpush2.msra.mxu0 0.0
    %461 = vmatprep.subr.mxu0 0.0
    %462 = vmatpush2.msra.mxu0 0.0
    %463 = vmatprep.subr.mxu0 0.0
    %464 = vmatpush2.msra.mxu0 0.0
    %465 = vmatprep.subr.mxu0 0.0
    %466 = vmatpush2.msra.mxu0 0.0
    %467 = vmatprep.subr.mxu0 0.0
    %468 = vmatpush2.msra.mxu0 0.0
    %469 = vmatprep.subr.mxu0 0.0
    %470 = vmatpush2.msra.mxu0 0.0
    %471 = vmatprep.subr.mxu0 0.0
    %472 = vmatpush2.msra.mxu0 0.0
    %473 = vmatprep.subr.mxu0 0.0
    %474 = vmatpush2.msra.mxu0 0.0
    %475 = vmatprep.subr.mxu0 0.0
    %476 = vmatpush2.msra.mxu0 0.0
    %477 = vmatprep.subr.mxu0 0.0
    %478 = vmatpush2.msra.mxu0 0.0
    %479 = vmatprep.subr.mxu0 0.0
    %480 = vmatpush2.msra.mxu0 0.0
    %481 = vmatprep.mubr.f32.mxu0 0.0
    %482 = vmatmul.mubr.f32.gmra.mxu0 0.0
    %v483 = vpop.f32.mrf.mxu0
    %v484 = vadd.f32 %v399, %v483
    %v485 = vpop.f32.mrf.mxu0
    %v486 = vadd.f32 %v403, %v485
    %487 = vdwg.mxu0
    %488 = vmatprep.subr.mxu0 0.0
    %489 = vmatpush1.msra.mxu0 %v393
    %490 = vmatprep.subr.mxu0 0.0
    %491 = vmatpush1.msra.mxu0 %v390
    %492 = vmatprep.subr.mxu0 0.0
    %493 = vmatpush1.msra.mxu0 %v387
    %494 = vmatprep.subr.mxu0 0.0
    %495 = vmatpush1.msra.mxu0 %v384
    %496 = vmatprep.subr.mxu0 0.0
    %497 = vmatpush1.msra.mxu0 %v381
    %498 = vmatprep.subr.mxu0 0.0
    %499 = vmatpush1.msra.mxu0 %v378
    %500 = vmatprep.subr.mxu0 0.0
    %501 = vmatpush1.msra.mxu0 %v375
    %502 = vmatprep.subr.mxu0 0.0
    %503 = vmatpush1.msra.mxu0 %v372
    %504 = vmatprep.subr.mxu0 0.0
    %505 = vmatpush1.msra.mxu0 %v369
    %506 = vmatprep.subr.mxu0 0.0
    %507 = vmatpush1.msra.mxu0 %v366
    %508 = vmatprep.subr.mxu0 0.0
    %509 = vmatpush1.msra.mxu0 %v363
    %510 = vmatprep.subr.mxu0 0.0
    %511 = vmatpush1.msra.mxu0 %v360
    %512 = vmatprep.subr.mxu0 0.0
    %513 = vmatpush1.msra.mxu0 %v357
    %514 = vmatprep.subr.mxu0 0.0
    %515 = vmatpush1.msra.mxu0 %v354
    %516 = vmatprep.subr.mxu0 0.0
    %517 = vmatpush1.msra.mxu0 %v351
    %518 = vmatprep.subr.mxu0 0.0
    %519 = vmatpush1.msra.mxu0 %v348
    %520 = vmatprep.subr.mxu0 0.0
    %521 = vmatpush2.msra.mxu0 0.0
    %522 = vmatprep.subr.mxu0 0.0
    %523 = vmatpush2.msra.mxu0 0.0
    %524 = vmatprep.subr.mxu0 0.0
    %525 = vmatpush2.msra.mxu0 0.0
    %526 = vmatprep.subr.mxu0 0.0
    %527 = vmatpush2.msra.mxu0 0.0
    %528 = vmatprep.subr.mxu0 0.0
    %529 = vmatpush2.msra.mxu0 0.0
    %530 = vmatprep.subr.mxu0 0.0
    %531 = vmatpush2.msra.mxu0 0.0
    %532 = vmatprep.subr.mxu0 0.0
    %533 = vmatpush2.msra.mxu0 0.0
    %534 = vmatprep.subr.mxu0 0.0
    %535 = vmatpush2.msra.mxu0 0.0
    %536 = vmatprep.subr.mxu0 0.0
    %537 = vmatpush2.msra.mxu0 0.0
    %538 = vmatprep.subr.mxu0 0.0
    %539 = vmatpush2.msra.mxu0 0.0
    %540 = vmatprep.subr.mxu0 0.0
    %541 = vmatpush2.msra.mxu0 0.0
    %542 = vmatprep.subr.mxu0 0.0
    %543 = vmatpush2.msra.mxu0 0.0
    %544 = vmatprep.subr.mxu0 0.0
    %545 = vmatpush2.msra.mxu0 0.0
    %546 = vmatprep.subr.mxu0 0.0
    %547 = vmatpush2.msra.mxu0 0.0
    %548 = vmatprep.subr.mxu0 0.0
    %549 = vmatpush2.msra.mxu0 0.0
    %550 = vmatprep.subr.mxu0 0.0
    %551 = vmatpush2.msra.mxu0 0.0
    %552 = vmatprep.mubr.f32.mxu0 0.0
    %553 = vmatmul.mubr.f32.gmra.mxu0 0.0
    %v554 = vpop.f32.mrf.mxu0
    %v555 = vadd.f32 %v407, %v554
    %v556 = vpop.f32.mrf.mxu0
    %557 = vdwg.mxu0
    %v558 = vadd.f32 %v414, %v484
    %v559 = vxor.u32 %v558, 2147483648
    %v560 = vmul.f32 %v559, 1.442695
    %v561 = vpow.pop %v560
    %v562 = vadd.f32 %v561, 1.0
    %v563 = vrcp.pop %v562
    %v564 = vmul.f32 1.0, %v563
    %v565 = vadd.f32 %v415, %v486
    %v566 = vxor.u32 %v565, 2147483648
    %v567 = vmul.f32 %v566, 1.442695
    %v568 = vpow.pop %v567
    %v569 = vadd.f32 %v568, 1.0
    %v570 = vrcp.pop %v569
    %v571 = vmul.f32 1.0, %v570
    %v572 = vmul.f32 %v564, %v555
    %v573 = vadd.f32 %v416, %v572
    %v574 = vtanh.pop %v573
    %v575 = vsub.f32 1.0, %v571
    %v576 = vmul.f32 %v575, %v574
    %v577 = vmul.f32 %v571, 0.0
    %v578 = vadd.f32 %v576, %v577
    %s579 = smul.u32 1, 3
    %s580 = smul.addr %s579, 8
    %s581 = scalar_lea.vmem [#allocation2], %s580
    %v582 = vld [vmem:[%s581] sm:$0xff]
    %v583 = vld [vmem:[%s581 + $0x8] sm:$0xff]
    %v584 = vld [vmem:[%s581 + $0x10] sm:$0xff]
    %585 = vmatprep.subr.mxu0 %v392
    %586 = vmatpush1.msra.mxu0 %v391
    %587 = vmatprep.subr.mxu0 %v389
    %588 = vmatpush1.msra.mxu0 %v388
    %589 = vmatprep.subr.mxu0 %v386
    %590 = vmatpush1.msra.mxu0 %v385
    %591 = vmatprep.subr.mxu0 %v383
    %592 = vmatpush1.msra.mxu0 %v382
    %593 = vmatprep.subr.mxu0 %v380
    %594 = vmatpush1.msra.mxu0 %v379
    %595 = vmatprep.subr.mxu0 %v377
    %596 = vmatpush1.msra.mxu0 %v376
    %597 = vmatprep.subr.mxu0 %v374
    %598 = vmatpush1.msra.mxu0 %v373
    %599 = vmatprep.subr.mxu0 %v371
    %600 = vmatpush1.msra.mxu0 %v370
    %601 = vmatprep.subr.mxu0 %v368
    %602 = vmatpush1.msra.mxu0 %v367
    %603 = vmatprep.subr.mxu0 %v365
    %604 = vmatpush1.msra.mxu0 %v364
    %605 = vmatprep.subr.mxu0 %v362
    %606 = vmatpush1.msra.mxu0 %v361
    %607 = vmatprep.subr.mxu0 %v359
    %608 = vmatpush1.msra.mxu0 %v358
    %609 = vmatprep.subr.mxu0 %v356
    %610 = vmatpush1.msra.mxu0 %v355
    %611 = vmatprep.subr.mxu0 %v353
    %612 = vmatpush1.msra.mxu0 %v352
    %613 = vmatprep.subr.mxu0 %v350
    %614 = vmatpush1.msra.mxu0 %v349
    %615 = vmatprep.subr.mxu0 %v347
    %616 = vmatpush1.msra.mxu0 %v346
    %617 = vmatprep.subr.mxu0 0.0
    %618 = vmatpush2.msra.mxu0 0.0
    %619 = vmatprep.subr.mxu0 0.0
    %620 = vmatpush2.msra.mxu0 0.0
    %621 = vmatprep.subr.mxu0 0.0
    %622 = vmatpush2.msra.mxu0 0.0
    %623 = vmatprep.subr.mxu0 0.0
    %624 = vmatpush2.msra.mxu0 0.0
    %625 = vmatprep.subr.mxu0 0.0
    %626 = vmatpush2.msra.mxu0 0.0
    %627 = vmatprep.subr.mxu0 0.0
    %628 = vmatpush2.msra.mxu0 0.0
    %629 = vmatprep.subr.mxu0 0.0
    %630 = vmatpush2.msra.mxu0 0.0
    %631 = vmatprep.subr.mxu0 0.0
    %632 = vmatpush2.msra.mxu0 0.0
    %633 = vmatprep.subr.mxu0 0.0
    %634 = vmatpush2.msra.mxu0 0.0
    %635 = vmatprep.subr.mxu0 0.0
    %636 = vmatpush2.msra.mxu0 0.0
    %637 = vmatprep.subr.mxu0 0.0
    %638 = vmatpush2.msra.mxu0 0.0
    %639 = vmatprep.subr.mxu0 0.0
    %640 = vmatpush2.msra.mxu0 0.0
    %641 = vmatprep.subr.mxu0 0.0
    %642 = vmatpush2.msra.mxu0 0.0
    %643 = vmatprep.subr.mxu0 0.0
    %644 = vmatpush2.msra.mxu0 0.0
    %645 = vmatprep.subr.mxu0 0.0
    %646 = vmatpush2.msra.mxu0 0.0
    %647 = vmatprep.subr.mxu0 0.0
    %648 = vmatpush2.msra.mxu0 0.0
    %649 = vmatprep.mubr.f32.mxu0 0.0
    %650 = vmatmul.mubr.f32.gmra.mxu0 %v578
    %v651 = vpop.f32.mrf.mxu0
    %v652 = vadd.f32 %v399, %v651
    %v653 = vpop.f32.mrf.mxu0
    %v654 = vadd.f32 %v403, %v653
    %655 = vdwg.mxu0
    %656 = vmatprep.subr.mxu0 0.0
    %657 = vmatpush1.msra.mxu0 %v393
    %658 = vmatprep.subr.mxu0 0.0
    %659 = vmatpush1.msra.mxu0 %v390
    %660 = vmatprep.subr.mxu0 0.0
    %661 = vmatpush1.msra.mxu0 %v387
    %662 = vmatprep.subr.mxu0 0.0
    %663 = vmatpush1.msra.mxu0 %v384
    %664 = vmatprep.subr.mxu0 0.0
    %665 = vmatpush1.msra.mxu0 %v381
    %666 = vmatprep.subr.mxu0 0.0
    %667 = vmatpush1.msra.mxu0 %v378
    %668 = vmatprep.subr.mxu0 0.0
    %669 = vmatpush1.msra.mxu0 %v375
    %670 = vmatprep.subr.mxu0 0.0
    %671 = vmatpush1.msra.mxu0 %v372
    %672 = vmatprep.subr.mxu0 0.0
    %673 = vmatpush1.msra.mxu0 %v369
    %674 = vmatprep.subr.mxu0 0.0
    %675 = vmatpush1.msra.mxu0 %v366
    %676 = vmatprep.subr.mxu0 0.0
    %677 = vmatpush1.msra.mxu0 %v363
    %678 = vmatprep.subr.mxu0 0.0
    %679 = vmatpush1.msra.mxu0 %v360
    %680 = vmatprep.subr.mxu0 0.0
    %681 = vmatpush1.msra.mxu0 %v357
    %682 = vmatprep.subr.mxu0 0.0
    %683 = vmatpush1.msra.mxu0 %v354
    %684 = vmatprep.subr.mxu0 0.0
    %685 = vmatpush1.msra.mxu0 %v351
    %686 = vmatprep.subr.mxu0 0.0
    %687 = vmatpush1.msra.mxu0 %v348
    %688 = vmatprep.subr.mxu0 0.0
    %689 = vmatpush2.msra.mxu0 0.0
    %690 = vmatprep.subr.mxu0 0.0
    %691 = vmatpush2.msra.mxu0 0.0
    %692 = vmatprep.subr.mxu0 0.0
    %693 = vmatpush2.msra.mxu0 0.0
    %694 = vmatprep.subr.mxu0 0.0
    %695 = vmatpush2.msra.mxu0 0.0
    %696 = vmatprep.subr.mxu0 0.0
    %697 = vmatpush2.msra.mxu0 0.0
    %698 = vmatprep.subr.mxu0 0.0
    %699 = vmatpush2.msra.mxu0 0.0
    %700 = vmatprep.subr.mxu0 0.0
    %701 = vmatpush2.msra.mxu0 0.0
    %702 = vmatprep.subr.mxu0 0.0
    %703 = vmatpush2.msra.mxu0 0.0
    %704 = vmatprep.subr.mxu0 0.0
    %705 = vmatpush2.msra.mxu0 0.0
    %706 = vmatprep.subr.mxu0 0.0
    %707 = vmatpush2.msra.mxu0 0.0
    %708 = vmatprep.subr.mxu0 0.0
    %709 = vmatpush2.msra.mxu0 0.0
    %710 = vmatprep.subr.mxu0 0.0
    %711 = vmatpush2.msra.mxu0 0.0
    %712 = vmatprep.subr.mxu0 0.0
    %713 = vmatpush2.msra.mxu0 0.0
    %714 = vmatprep.subr.mxu0 0.0
    %715 = vmatpush2.msra.mxu0 0.0
    %716 = vmatprep.subr.mxu0 0.0
    %717 = vmatpush2.msra.mxu0 0.0
    %718 = vmatprep.subr.mxu0 0.0
    %719 = vmatpush2.msra.mxu0 0.0
    %720 = vmatprep.mubr.f32.mxu0 0.0
    %721 = vmatmul.mubr.f32.gmra.mxu0 %v578
    %v722 = vpop.f32.mrf.mxu0
    %v723 = vadd.f32 %v407, %v722
    %v724 = vpop.f32.mrf.mxu0
    %725 = vdwg.mxu0
    %v726 = vadd.f32 %v582, %v652
    %v727 = vxor.u32 %v726, 2147483648
    %v728 = vmul.f32 %v727, 1.442695
    %v729 = vpow.pop %v728
    %v730 = vadd.f32 %v729, 1.0
    %v731 = vrcp.pop %v730
    %v732 = vmul.f32 1.0, %v731
    %v733 = vadd.f32 %v583, %v654
    %v734 = vxor.u32 %v733, 2147483648
    %v735 = vmul.f32 %v734, 1.442695
    %v736 = vpow.pop %v735
    %v737 = vadd.f32 %v736, 1.0
    %v738 = vrcp.pop %v737
    %v739 = vmul.f32 1.0, %v738
    %v740 = vmul.f32 %v732, %v723
    %v741 = vadd.f32 %v584, %v740
    %v742 = vtanh.pop %v741
    %v743 = vsub.f32 1.0, %v739
    %v744 = vmul.f32 %v743, %v742
    %v745 = vmul.f32 %v739, %v578
    %v746 = vadd.f32 %v744, %v745
    %s747 = smul.u32 2, 3
    %s748 = smul.addr %s747, 8
    %s749 = scalar_lea.vmem [#allocation2], %s748
    %v750 = vld [vmem:[%s749] sm:$0xff]
    %v751 = vld [vmem:[%s749 + $0x8] sm:$0xff]
    %v752 = vld [vmem:[%s749 + $0x10] sm:$0xff]
    %753 = vmatprep.subr.mxu0 %v392
    %754 = vmatpush1.msra.mxu0 %v391
    %755 = vmatprep.subr.mxu0 %v389
    %756 = vmatpush1.msra.mxu0 %v388
    %757 = vmatprep.subr.mxu0 %v386
    %758 = vmatpush1.msra.mxu0 %v385
    %759 = vmatprep.subr.mxu0 %v383
    %760 = vmatpush1.msra.mxu0 %v382
    %761 = vmatprep.subr.mxu0 %v380
    %762 = vmatpush1.msra.mxu0 %v379
    %763 = vmatprep.subr.mxu0 %v377
    %764 = vmatpush1.msra.mxu0 %v376
    %765 = vmatprep.subr.mxu0 %v374
    %766 = vmatpush1.msra.mxu0 %v373
    %767 = vmatprep.subr.mxu0 %v371
    %768 = vmatpush1.msra.mxu0 %v370
    %769 = vmatprep.subr.mxu0 %v368
    %770 = vmatpush1.msra.mxu0 %v367
    %771 = vmatprep.subr.mxu0 %v365
    %772 = vmatpush1.msra.mxu0 %v364
    %773 = vmatprep.subr.mxu0 %v362
    %774 = vmatpush1.msra.mxu0 %v361
    %775 = vmatprep.subr.mxu0 %v359
    %776 = vmatpush1.msra.mxu0 %v358
    %777 = vmatprep.subr.mxu0 %v356
    %778 = vmatpush1.msra.mxu0 %v355
    %779 = vmatprep.subr.mxu0 %v353
    %780 = vmatpush1.msra.mxu0 %v352
    %781 = vmatprep.subr.mxu0 %v350
    %782 = vmatpush1.msra.mxu0 %v349
    %783 = vmatprep.subr.mxu0 %v347
    %784 = vmatpush1.msra.mxu0 %v346
    %785 = vmatprep.subr.mxu0 0.0
    %786 = vmatpush2.msra.mxu0 0.0
    %787 = vmatprep.subr.mxu0 0.0
    %788 = vmatpush2.msra.mxu0 0.0
    %789 = vmatprep.subr.mxu0 0.0
    %790 = vmatpush2.msra.mxu0 0.0
    %791 = vmatprep.subr.mxu0 0.0
    %792 = vmatpush2.msra.mxu0 0.0
    %793 = vmatprep.subr.mxu0 0.0
    %794 = vmatpush2.msra.mxu0 0.0
    %795 = vmatprep.subr.mxu0 0.0
    %796 = vmatpush2.msra.mxu0 0.0
    %797 = vmatprep.subr.mxu0 0.0
    %798 = vmatpush2.msra.mxu0 0.0
    %799 = vmatprep.subr.mxu0 0.0
    %800 = vmatpush2.msra.mxu0 0.0
    %801 = vmatprep.subr.mxu0 0.0
    %802 = vmatpush2.msra.mxu0 0.0
    %803 = vmatprep.subr.mxu0 0.0
    %804 = vmatpush2.msra.mxu0 0.0
    %805 = vmatprep.subr.mxu0 0.0
    %806 = vmatpush2.msra.mxu0 0.0
    %807 = vmatprep.subr.mxu0 0.0
    %808 = vmatpush2.msra.mxu0 0.0
    %809 = vmatprep.subr.mxu0 0.0
    %810 = vmatpush2.msra.mxu0 0.0
    %811 = vmatprep.subr.mxu0 0.0
    %812 = vmatpush2.msra.mxu0 0.0
    %813 = vmatprep.subr.mxu0 0.0
    %814 = vmatpush2.msra.mxu0 0.0
    %815 = vmatprep.subr.mxu0 0.0
    %816 = vmatpush2.msra.mxu0 0.0
    %817 = vmatprep.mubr.f32.mxu0 0.0
    %818 = vmatmul.mubr.f32.gmra.mxu0 %v746
    %v819 = vpop.f32.mrf.mxu0
    %v820 = vadd.f32 %v399, %v819
    %v821 = vpop.f32.mrf.mxu0
    %v822 = vadd.f32 %v403, %v821
    %823 = vdwg.mxu0
    %824 = vmatprep.subr.mxu0 0.0
    %825 = vmatpush1.msra.mxu0 %v393
    %826 = vmatprep.subr.mxu0 0.0
    %827 = vmatpush1.msra.mxu0 %v390
    %828 = vmatprep.subr.mxu0 0.0
    %829 = vmatpush1.msra.mxu0 %v387
    %830 = vmatprep.subr.mxu0 0.0
    %831 = vmatpush1.msra.mxu0 %v384
    %832 = vmatprep.subr.mxu0 0.0
    %833 = vmatpush1.msra.mxu0 %v381
    %834 = vmatprep.subr.mxu0 0.0
    %835 = vmatpush1.msra.mxu0 %v378
    %836 = vmatprep.subr.mxu0 0.0
    %837 = vmatpush1.msra.mxu0 %v375
    %838 = vmatprep.subr.mxu0 0.0
    %839 = vmatpush1.msra.mxu0 %v372
    %840 = vmatprep.subr.mxu0 0.0
    %841 = vmatpush1.msra.mxu0 %v369
    %842 = vmatprep.subr.mxu0 0.0
    %843 = vmatpush1.msra.mxu0 %v366
    %844 = vmatprep.subr.mxu0 0.0
    %845 = vmatpush1.msra.mxu0 %v363
    %846 = vmatprep.subr.mxu0 0.0
    %847 = vmatpush1.msra.mxu0 %v360
    %848 = vmatprep.subr.mxu0 0.0
    %849 = vmatpush1.msra.mxu0 %v357
    %850 = vmatprep.subr.mxu0 0.0
    %851 = vmatpush1.msra.mxu0 %v354
    %852 = vmatprep.subr.mxu0 0.0
    %853 = vmatpush1.msra.mxu0 %v351
    %854 = vmatprep.subr.mxu0 0.0
    %855 = vmatpush1.msra.mxu0 %v348
    %856 = vmatprep.subr.mxu0 0.0
    %857 = vmatpush2.msra.mxu0 0.0
    %858 = vmatprep.subr.mxu0 0.0
    %859 = vmatpush2.msra.mxu0 0.0
    %860 = vmatprep.subr.mxu0 0.0
    %861 = vmatpush2.msra.mxu0 0.0
    %862 = vmatprep.subr.mxu0 0.0
    %863 = vmatpush2.msra.mxu0 0.0
    %864 = vmatprep.subr.mxu0 0.0
    %865 = vmatpush2.msra.mxu0 0.0
    %866 = vmatprep.subr.mxu0 0.0
    %867 = vmatpush2.msra.mxu0 0.0
    %868 = vmatprep.subr.mxu0 0.0
    %869 = vmatpush2.msra.mxu0 0.0
    %870 = vmatprep.subr.mxu0 0.0
    %871 = vmatpush2.msra.mxu0 0.0
    %872 = vmatprep.subr.mxu0 0.0
    %873 = vmatpush2.msra.mxu0 0.0
    %874 = vmatprep.subr.mxu0 0.0
    %875 = vmatpush2.msra.mxu0 0.0
    %876 = vmatprep.subr.mxu0 0.0
    %877 = vmatpush2.msra.mxu0 0.0
    %878 = vmatprep.subr.mxu0 0.0
    %879 = vmatpush2.msra.mxu0 0.0
    %880 = vmatprep.subr.mxu0 0.0
    %881 = vmatpush2.msra.mxu0 0.0
    %882 = vmatprep.subr.mxu0 0.0
    %883 = vmatpush2.msra.mxu0 0.0
    %884 = vmatprep.subr.mxu0 0.0
    %885 = vmatpush2.msra.mxu0 0.0
    %886 = vmatprep.subr.mxu0 0.0
    %887 = vmatpush2.msra.mxu0 0.0
    %888 = vmatprep.mubr.f32.mxu0 0.0
    %889 = vmatmul.mubr.f32.gmra.mxu0 %v746
    %v890 = vpop.f32.mrf.mxu0
    %v891 = vadd.f32 %v407, %v890
    %v892 = vpop.f32.mrf.mxu0
    %893 = vdwg.mxu0
    %v894 = vadd.f32 %v750, %v820
    %v895 = vxor.u32 %v894, 2147483648
    %v896 = vmul.f32 %v895, 1.442695
    %v897 = vpow.pop %v896
    %v898 = vadd.f32 %v897, 1.0
    %v899 = vrcp.pop %v898
    %v900 = vmul.f32 1.0, %v899
    %v901 = vadd.f32 %v751, %v822
    %v902 = vxor.u32 %v901, 2147483648
    %v903 = vmul.f32 %v902, 1.442695
    %v904 = vpow.pop %v903
    %v905 = vadd.f32 %v904, 1.0
    %v906 = vrcp.pop %v905
    %v907 = vmul.f32 1.0, %v906
    %v908 = vmul.f32 %v900, %v891
    %v909 = vadd.f32 %v752, %v908
    %v910 = vtanh.pop %v909
    %v911 = vsub.f32 1.0, %v907
    %v912 = vmul.f32 %v911, %v910
    %v913 = vmul.f32 %v907, %v746
    %v914 = vadd.f32 %v912, %v913
    %s915 = smul.u32 3, 3
    %s916 = smul.addr %s915, 8
    %s917 = scalar_lea.vmem [#allocation2], %s916
    %v918 = vld [vmem:[%s917] sm:$0xff]
    %v919 = vld [vmem:[%s917 + $0x8] sm:$0xff]
    %v920 = vld [vmem:[%s917 + $0x10] sm:$0xff]
    %921 = vmatprep.subr.mxu0 %v392
    %922 = vmatpush1.msra.mxu0 %v391
    %923 = vmatprep.subr.mxu0 %v389
    %924 = vmatpush1.msra.mxu0 %v388
    %925 = vmatprep.subr.mxu0 %v386
    %926 = vmatpush1.msra.mxu0 %v385
    %927 = vmatprep.subr.mxu0 %v383
    %928 = vmatpush1.msra.mxu0 %v382
    %929 = vmatprep.subr.mxu0 %v380
    %930 = vmatpush1.msra.mxu0 %v379
    %931 = vmatprep.subr.mxu0 %v377
    %932 = vmatpush1.msra.mxu0 %v376
    %933 = vmatprep.subr.mxu0 %v374
    %934 = vmatpush1.msra.mxu0 %v373
    %935 = vmatprep.subr.mxu0 %v371
    %936 = vmatpush1.msra.mxu0 %v370
    %937 = vmatprep.subr.mxu0 %v368
    %938 = vmatpush1.msra.mxu0 %v367
    %939 = vmatprep.subr.mxu0 %v365
    %940 = vmatpush1.msra.mxu0 %v364
    %941 = vmatprep.subr.mxu0 %v362
    %942 = vmatpush1.msra.mxu0 %v361
    %943 = vmatprep.subr.mxu0 %v359
    %944 = vmatpush1.msra.mxu0 %v358
    %945 = vmatprep.subr.mxu0 %v356
    %946 = vmatpush1.msra.mxu0 %v355
    %947 = vmatprep.subr.mxu0 %v353
    %948 = vmatpush1.msra.mxu0 %v352
    %949 = vmatprep.subr.mxu0 %v350
    %950 = vmatpush1.msra.mxu0 %v349
    %951 = vmatprep.subr.mxu0 %v347
    %952 = vmatpush1.msra.mxu0 %v346
    %953 = vmatprep.subr.mxu0 0.0
    %954 = vmatpush2.msra.mxu0 0.0
    %955 = vmatprep.subr.mxu0 0.0
    %956 = vmatpush2.msra.mxu0 0.0
    %957 = vmatprep.subr.mxu0 0.0
    %958 = vmatpush2.msra.mxu0 0.0
    %959 = vmatprep.subr.mxu0 0.0
    %960 = vmatpush2.msra.mxu0 0.0
    %961 = vmatprep.subr.mxu0 0.0
    %962 = vmatpush2.msra.mxu0 0.0
    %963 = vmatprep.subr.mxu0 0.0
    %964 = vmatpush2.msra.mxu0 0.0
    %965 = vmatprep.subr.mxu0 0.0
    %966 = vmatpush2.msra.mxu0 0.0
    %967 = vmatprep.subr.mxu0 0.0
    %968 = vmatpush2.msra.mxu0 0.0
    %969 = vmatprep.subr.mxu0 0.0
    %970 = vmatpush2.msra.mxu0 0.0
    %971 = vmatprep.subr.mxu0 0.0
    %972 = vmatpush2.msra.mxu0 0.0
    %973 = vmatprep.subr.mxu0 0.0
    %974 = vmatpush2.msra.mxu0 0.0
    %975 = vmatprep.subr.mxu0 0.0
    %976 = vmatpush2.msra.mxu0 0.0
    %977 = vmatprep.subr.mxu0 0.0
    %978 = vmatpush2.msra.mxu0 0.0
    %979 = vmatprep.subr.mxu0 0.0
    %980 = vmatpush2.msra.mxu0 0.0
    %981 = vmatprep.subr.mxu0 0.0
    %982 = vmatpush2.msra.mxu0 0.0
    %983 = vmatprep.subr.mxu0 0.0
    %984 = vmatpush2.msra.mxu0 0.0
    %985 = vmatprep.mubr.f32.mxu0 0.0
    %986 = vmatmul.mubr.f32.gmra.mxu0 %v914
    %v987 = vpop.f32.mrf.mxu0
    %v988 = vadd.f32 %v399, %v987
    %v989 = vpop.f32.mrf.mxu0
    %v990 = vadd.f32 %v403, %v989
    %991 = vdwg.mxu0
    %992 = vmatprep.subr.mxu0 0.0
    %993 = vmatpush1.msra.mxu0 %v393
    %994 = vmatprep.subr.mxu0 0.0
    %995 = vmatpush1.msra.mxu0 %v390
    %996 = vmatprep.subr.mxu0 0.0
    %997 = vmatpush1.msra.mxu0 %v387
    %998 = vmatprep.subr.mxu0 0.0
    %999 = vmatpush1.msra.mxu0 %v384
    %1000 = vmatprep.subr.mxu0 0.0
    %1001 = vmatpush1.msra.mxu0 %v381
    %1002 = vmatprep.subr.mxu0 0.0
    %1003 = vmatpush1.msra.mxu0 %v378
    %1004 = vmatprep.subr.mxu0 0.0
    %1005 = vmatpush1.msra.mxu0 %v375
    %1006 = vmatprep.subr.mxu0 0.0
    %1007 = vmatpush1.msra.mxu0 %v372
    %1008 = vmatprep.subr.mxu0 0.0
    %1009 = vmatpush1.msra.mxu0 %v369
    %1010 = vmatprep.subr.mxu0 0.0
    %1011 = vmatpush1.msra.mxu0 %v366
    %1012 = vmatprep.subr.mxu0 0.0
    %1013 = vmatpush1.msra.mxu0 %v363
    %1014 = vmatprep.subr.mxu0 0.0
    %1015 = vmatpush1.msra.mxu0 %v360
    %1016 = vmatprep.subr.mxu0 0.0
    %1017 = vmatpush1.msra.mxu0 %v357
    %1018 = vmatprep.subr.mxu0 0.0
    %1019 = vmatpush1.msra.mxu0 %v354
    %1020 = vmatprep.subr.mxu0 0.0
    %1021 = vmatpush1.msra.mxu0 %v351
    %1022 = vmatprep.subr.mxu0 0.0
    %1023 = vmatpush1.msra.mxu0 %v348
    %1024 = vmatprep.subr.mxu0 0.0
    %1025 = vmatpush2.msra.mxu0 0.0
    %1026 = vmatprep.subr.mxu0 0.0
    %1027 = vmatpush2.msra.mxu0 0.0
    %1028 = vmatprep.subr.mxu0 0.0
    %1029 = vmatpush2.msra.mxu0 0.0
    %1030 = vmatprep.subr.mxu0 0.0
    %1031 = vmatpush2.msra.mxu0 0.0
    %1032 = vmatprep.subr.mxu0 0.0
    %1033 = vmatpush2.msra.mxu0 0.0
    %1034 = vmatprep.subr.mxu0 0.0
    %1035 = vmatpush2.msra.mxu0 0.0
    %1036 = vmatprep.subr.mxu0 0.0
    %1037 = vmatpush2.msra.mxu0 0.0
    %1038 = vmatprep.subr.mxu0 0.0
    %1039 = vmatpush2.msra.mxu0 0.0
    %1040 = vmatprep.subr.mxu0 0.0
    %1041 = vmatpush2.msra.mxu0 0.0
    %1042 = vmatprep.subr.mxu0 0.0
    %1043 = vmatpush2.msra.mxu0 0.0
    %1044 = vmatprep.subr.mxu0 0.0
    %1045 = vmatpush2.msra.mxu0 0.0
    %1046 = vmatprep.subr.mxu0 0.0
    %1047 = vmatpush2.msra.mxu0 0.0
    %1048 = vmatprep.subr.mxu0 0.0
    %1049 = vmatpush2.msra.mxu0 0.0
    %1050 = vmatprep.subr.mxu0 0.0
    %1051 = vmatpush2.msra.mxu0 0.0
    %1052 = vmatprep.subr.mxu0 0.0
    %1053 = vmatpush2.msra.mxu0 0.0
    %1054 = vmatprep.subr.mxu0 0.0
    %1055 = vmatpush2.msra.mxu0 0.0
    %1056 = vmatprep.mubr.f32.mxu0 0.0
    %1057 = vmatmul.mubr.f32.gmra.mxu0 %v914
    %v1058 = vpop.f32.mrf.mxu0
    %v1059 = vadd.f32 %v407, %v1058
    %v1060 = vpop.f32.mrf.mxu0
    %1061 = vdwg.mxu0
    %v1062 = vadd.f32 %v918, %v988
    %v1063 = vxor.u32 %v1062, 2147483648
    %v1064 = vmul.f32 %v1063, 1.442695
    %v1065 = vpow.pop %v1064
    %v1066 = vadd.f32 %v1065, 1.0
    %v1067 = vrcp.pop %v1066
    %v1068 = vmul.f32 1.0, %v1067
    %v1069 = vadd.f32 %v919, %v990
    %v1070 = vxor.u32 %v1069, 2147483648
    %v1071 = vmul.f32 %v1070, 1.442695
    %v1072 = vpow.pop %v1071
    %v1073 = vadd.f32 %v1072, 1.0
    %v1074 = vrcp.pop %v1073
    %v1075 = vmul.f32 1.0, %v1074
    %v1076 = vmul.f32 %v1068, %v1059
    %v1077 = vadd.f32 %v920, %v1076
    %v1078 = vtanh.pop %v1077
    %v1079 = vsub.f32 1.0, %v1075
    %v1080 = vmul.f32 %v1079, %v1078
    %v1081 = vmul.f32 %v1075, %v914
    %v1082 = vadd.f32 %v1080, %v1081
    %s1083 = smul.u32 4, 3
    %s1084 = smul.addr %s1083, 8
    %s1085 = scalar_lea.vmem [#allocation2], %s1084
    %v1086 = vld [vmem:[%s1085] sm:$0xff]
    %v1087 = vld [vmem:[%s1085 + $0x8] sm:$0xff]
    %v1088 = vld [vmem:[%s1085 + $0x10] sm:$0xff]
    %1089 = vmatprep.subr.mxu0 %v392
    %1090 = vmatpush1.msra.mxu0 %v391
    %1091 = vmatprep.subr.mxu0 %v389
    %1092 = vmatpush1.msra.mxu0 %v388
    %1093 = vmatprep.subr.mxu0 %v386
    %1094 = vmatpush1.msra.mxu0 %v385
    %1095 = vmatprep.subr.mxu0 %v383
    %1096 = vmatpush1.msra.mxu0 %v382
    %1097 = vmatprep.subr.mxu0 %v380
    %1098 = vmatpush1.msra.mxu0 %v379
    %1099 = vmatprep.subr.mxu0 %v377
    %1100 = vmatpush1.msra.mxu0 %v376
    %1101 = vmatprep.subr.mxu0 %v374
    %1102 = vmatpush1.msra.mxu0 %v373
    %1103 = vmatprep.subr.mxu0 %v371
    %1104 = vmatpush1.msra.mxu0 %v370
    %1105 = vmatprep.subr.mxu0 %v368
    %1106 = vmatpush1.msra.mxu0 %v367
    %1107 = vmatprep.subr.mxu0 %v365
    %1108 = vmatpush1.msra.mxu0 %v364
    %1109 = vmatprep.subr.mxu0 %v362
    %1110 = vmatpush1.msra.mxu0 %v361
    %1111 = vmatprep.subr.mxu0 %v359
    %1112 = vmatpush1.msra.mxu0 %v358
    %1113 = vmatprep.subr.mxu0 %v356
    %1114 = vmatpush1.msra.mxu0 %v355
    %1115 = vmatprep.subr.mxu0 %v353
    %1116 = vmatpush1.msra.mxu0 %v352
    %1117 = vmatprep.subr.mxu0 %v350
    %1118 = vmatpush1.msra.mxu0 %v349
    %1119 = vmatprep.subr.mxu0 %v347
    %1120 = vmatpush1.msra.mxu0 %v346
    %1121 = vmatprep.subr.mxu0 0.0
    %1122 = vmatpush2.msra.mxu0 0.0
    %1123 = vmatprep.subr.mxu0 0.0
    %1124 = vmatpush2.msra.mxu0 0.0
    %1125 = vmatprep.subr.mxu0 0.0
    %1126 = vmatpush2.msra.mxu0 0.0
    %1127 = vmatprep.subr.mxu0 0.0
    %1128 = vmatpush2.msra.mxu0 0.0
    %1129 = vmatprep.subr.mxu0 0.0
    %1130 = vmatpush2.msra.mxu0 0.0
    %1131 = vmatprep.subr.mxu0 0.0
    %1132 = vmatpush2.msra.mxu0 0.0
    %1133 = vmatprep.subr.mxu0 0.0
    %1134 = vmatpush2.msra.mxu0 0.0
    %1135 = vmatprep.subr.mxu0 0.0
    %1136 = vmatpush2.msra.mxu0 0.0
    %1137 = vmatprep.subr.mxu0 0.0
    %1138 = vmatpush2.msra.mxu0 0.0
    %1139 = vmatprep.subr.mxu0 0.0
    %1140 = vmatpush2.msra.mxu0 0.0
    %1141 = vmatprep.subr.mxu0 0.0
    %1142 = vmatpush2.msra.mxu0 0.0
    %1143 = vmatprep.subr.mxu0 0.0
    %1144 = vmatpush2.msra.mxu0 0.0
    %1145 = vmatprep.subr.mxu0 0.0
    %1146 = vmatpush2.msra.mxu0 0.0
    %1147 = vmatprep.subr.mxu0 0.0
    %1148 = vmatpush2.msra.mxu0 0.0
    %1149 = vmatprep.subr.mxu0 0.0
    %1150 = vmatpush2.msra.mxu0 0.0
    %1151 = vmatprep.subr.mxu0 0.0
    %1152 = vmatpush2.msra.mxu0 0.0
    %1153 = vmatprep.mubr.f32.mxu0 0.0
    %1154 = vmatmul.mubr.f32.gmra.mxu0 %v1082
    %v1155 = vpop.f32.mrf.mxu0
    %v1156 = vadd.f32 %v399, %v1155
    %v1157 = vpop.f32.mrf.mxu0
    %v1158 = vadd.f32 %v403, %v1157
    %1159 = vdwg.mxu0
    %1160 = vmatprep.subr.mxu0 0.0
    %1161 = vmatpush1.msra.mxu0 %v393
    %1162 = vmatprep.subr.mxu0 0.0
    %1163 = vmatpush1.msra.mxu0 %v390
    %1164 = vmatprep.subr.mxu0 0.0
    %1165 = vmatpush1.msra.mxu0 %v387
    %1166 = vmatprep.subr.mxu0 0.0
    %1167 = vmatpush1.msra.mxu0 %v384
    %1168 = vmatprep.subr.mxu0 0.0
    %1169 = vmatpush1.msra.mxu0 %v381
    %1170 = vmatprep.subr.mxu0 0.0
    %1171 = vmatpush1.msra.mxu0 %v378
    %1172 = vmatprep.subr.mxu0 0.0
    %1173 = vmatpush1.msra.mxu0 %v375
    %1174 = vmatprep.subr.mxu0 0.0
    %1175 = vmatpush1.msra.mxu0 %v372
    %1176 = vmatprep.subr.mxu0 0.0
    %1177 = vmatpush1.msra.mxu0 %v369
    %1178 = vmatprep.subr.mxu0 0.0
    %1179 = vmatpush1.msra.mxu0 %v366
    %1180 = vmatprep.subr.mxu0 0.0
    %1181 = vmatpush1.msra.mxu0 %v363
    %1182 = vmatprep.subr.mxu0 0.0
    %1183 = vmatpush1.msra.mxu0 %v360
    %1184 = vmatprep.subr.mxu0 0.0
    %1185 = vmatpush1.msra.mxu0 %v357
    %1186 = vmatprep.subr.mxu0 0.0
    %1187 = vmatpush1.msra.mxu0 %v354
    %1188 = vmatprep.subr.mxu0 0.0
    %1189 = vmatpush1.msra.mxu0 %v351
    %1190 = vmatprep.subr.mxu0 0.0
    %1191 = vmatpush1.msra.mxu0 %v348
    %1192 = vmatprep.subr.mxu0 0.0
    %1193 = vmatpush2.msra.mxu0 0.0
    %1194 = vmatprep.subr.mxu0 0.0
    %1195 = vmatpush2.msra.mxu0 0.0
    %1196 = vmatprep.subr.mxu0 0.0
    %1197 = vmatpush2.msra.mxu0 0.0
    %1198 = vmatprep.subr.mxu0 0.0
    %1199 = vmatpush2.msra.mxu0 0.0
    %1200 = vmatprep.subr.mxu0 0.0
    %1201 = vmatpush2.msra.mxu0 0.0
    %1202 = vmatprep.subr.mxu0 0.0
    %1203 = vmatpush2.msra.mxu0 0.0
    %1204 = vmatprep.subr.mxu0 0.0
    %1205 = vmatpush2.msra.mxu0 0.0
    %1206 = vmatprep.subr.mxu0 0.0
    %1207 = vmatpush2.msra.mxu0 0.0
    %1208 = vmatprep.subr.mxu0 0.0
    %1209 = vmatpush2.msra.mxu0 0.0
    %1210 = vmatprep.subr.mxu0 0.0
    %1211 = vmatpush2.msra.mxu0 0.0
    %1212 = vmatprep.subr.mxu0 0.0
    %1213 = vmatpush2.msra.mxu0 0.0
    %1214 = vmatprep.subr.mxu0 0.0
    %1215 = vmatpush2.msra.mxu0 0.0
    %1216 = vmatprep.subr.mxu0 0.0
    %1217 = vmatpush2.msra.mxu0 0.0
    %1218 = vmatprep.subr.mxu0 0.0
    %1219 = vmatpush2.msra.mxu0 0.0
    %1220 = vmatprep.subr.mxu0 0.0
    %1221 = vmatpush2.msra.mxu0 0.0
    %1222 = vmatprep.subr.mxu0 0.0
    %1223 = vmatpush2.msra.mxu0 0.0
    %1224 = vmatprep.mubr.f32.mxu0 0.0
    %1225 = vmatmul.mubr.f32.gmra.mxu0 %v1082
    %v1226 = vpop.f32.mrf.mxu0
    %v1227 = vadd.f32 %v407, %v1226
    %v1228 = vpop.f32.mrf.mxu0
    %1229 = vdwg.mxu0
    %v1230 = vadd.f32 %v1086, %v1156
    %v1231 = vxor.u32 %v1230, 2147483648
    %v1232 = vmul.f32 %v1231, 1.442695
    %v1233 = vpow.pop %v1232
    %v1234 = vadd.f32 %v1233, 1.0
    %v1235 = vrcp.pop %v1234
    %v1236 = vmul.f32 1.0, %v1235
    %v1237 = vadd.f32 %v1087, %v1158
    %v1238 = vxor.u32 %v1237, 2147483648
    %v1239 = vmul.f32 %v1238, 1.442695
    %v1240 = vpow.pop %v1239
    %v1241 = vadd.f32 %v1240, 1.0
    %v1242 = vrcp.pop %v1241
    %v1243 = vmul.f32 1.0, %v1242
    %v1244 = vmul.f32 %v1236, %v1227
    %v1245 = vadd.f32 %v1088, %v1244
    %v1246 = vtanh.pop %v1245
    %v1247 = vsub.f32 1.0, %v1243
    %v1248 = vmul.f32 %v1247, %v1246
    %v1249 = vmul.f32 %v1243, %v1082
    %v1250 = vadd.f32 %v1248, %v1249
    %s1251 = smul.u32 5, 3
    %s1252 = smul.addr %s1251, 8
    %s1253 = scalar_lea.vmem [#allocation2], %s1252
    %v1254 = vld [vmem:[%s1253] sm:$0xff]
    %v1255 = vld [vmem:[%s1253 + $0x8] sm:$0xff]
    %v1256 = vld [vmem:[%s1253 + $0x10] sm:$0xff]
    %1257 = vmatprep.subr.mxu0 %v392
    %1258 = vmatpush1.msra.mxu0 %v391
    %1259 = vmatprep.subr.mxu0 %v389
    %1260 = vmatpush1.msra.mxu0 %v388
    %1261 = vmatprep.subr.mxu0 %v386
    %1262 = vmatpush1.msra.mxu0 %v385
    %1263 = vmatprep.subr.mxu0 %v383
    %1264 = vmatpush1.msra.mxu0 %v382
    %1265 = vmatprep.subr.mxu0 %v380
    %1266 = vmatpush1.msra.mxu0 %v379
    %1267 = vmatprep.subr.mxu0 %v377
    %1268 = vmatpush1.msra.mxu0 %v376
    %1269 = vmatprep.subr.mxu0 %v374
    %1270 = vmatpush1.msra.mxu0 %v373
    %1271 = vmatprep.subr.mxu0 %v371
    %1272 = vmatpush1.msra.mxu0 %v370
    %1273 = vmatprep.subr.mxu0 %v368
    %1274 = vmatpush1.msra.mxu0 %v367
    %1275 = vmatprep.subr.mxu0 %v365
    %1276 = vmatpush1.msra.mxu0 %v364
    %1277 = vmatprep.subr.mxu0 %v362
    %1278 = vmatpush1.msra.mxu0 %v361
    %1279 = vmatprep.subr.mxu0 %v359
    %1280 = vmatpush1.msra.mxu0 %v358
    %1281 = vmatprep.subr.mxu0 %v356
    %1282 = vmatpush1.msra.mxu0 %v355
    %1283 = vmatprep.subr.mxu0 %v353
    %1284 = vmatpush1.msra.mxu0 %v352
    %1285 = vmatprep.subr.mxu0 %v350
    %1286 = vmatpush1.msra.mxu0 %v349
    %1287 = vmatprep.subr.mxu0 %v347
    %1288 = vmatpush1.msra.mxu0 %v346
    %1289 = vmatprep.subr.mxu0 0.0
    %1290 = vmatpush2.msra.mxu0 0.0
    %1291 = vmatprep.subr.mxu0 0.0
    %1292 = vmatpush2.msra.mxu0 0.0
    %1293 = vmatprep.subr.mxu0 0.0
    %1294 = vmatpush2.msra.mxu0 0.0
    %1295 = vmatprep.subr.mxu0 0.0
    %1296 = vmatpush2.msra.mxu0 0.0
    %1297 = vmatprep.subr.mxu0 0.0
    %1298 = vmatpush2.msra.mxu0 0.0
    %1299 = vmatprep.subr.mxu0 0.0
    %1300 = vmatpush2.msra.mxu0 0.0
    %1301 = vmatprep.subr.mxu0 0.0
    %1302 = vmatpush2.msra.mxu0 0.0
    %1303 = vmatprep.subr.mxu0 0.0
    %1304 = vmatpush2.msra.mxu0 0.0
    %1305 = vmatprep.subr.mxu0 0.0
    %1306 = vmatpush2.msra.mxu0 0.0
    %1307 = vmatprep.subr.mxu0 0.0
    %1308 = vmatpush2.msra.mxu0 0.0
    %1309 = vmatprep.subr.mxu0 0.0
    %1310 = vmatpush2.msra.mxu0 0.0
    %1311 = vmatprep.subr.mxu0 0.0
    %1312 = vmatpush2.msra.mxu0 0.0
    %1313 = vmatprep.subr.mxu0 0.0
    %1314 = vmatpush2.msra.mxu0 0.0
    %1315 = vmatprep.subr.mxu0 0.0
    %1316 = vmatpush2.msra.mxu0 0.0
    %1317 = vmatprep.subr.mxu0 0.0
    %1318 = vmatpush2.msra.mxu0 0.0
    %1319 = vmatprep.subr.mxu0 0.0
    %1320 = vmatpush2.msra.mxu0 0.0
    %1321 = vmatprep.mubr.f32.mxu0 0.0
    %1322 = vmatmul.mubr.f32.gmra.mxu0 %v1250
    %v1323 = vpop.f32.mrf.mxu0
    %v1324 = vadd.f32 %v399, %v1323
    %v1325 = vpop.f32.mrf.mxu0
    %v1326 = vadd.f32 %v403, %v1325
    %1327 = vdwg.mxu0
    %1328 = vmatprep.subr.mxu0 0.0
    %1329 = vmatpush1.msra.mxu0 %v393
    %1330 = vmatprep.subr.mxu0 0.0
    %1331 = vmatpush1.msra.mxu0 %v390
    %1332 = vmatprep.subr.mxu0 0.0
    %1333 = vmatpush1.msra.mxu0 %v387
    %1334 = vmatprep.subr.mxu0 0.0
    %1335 = vmatpush1.msra.mxu0 %v384
    %1336 = vmatprep.subr.mxu0 0.0
    %1337 = vmatpush1.msra.mxu0 %v381
    %1338 = vmatprep.subr.mxu0 0.0
    %1339 = vmatpush1.msra.mxu0 %v378
    %1340 = vmatprep.subr.mxu0 0.0
    %1341 = vmatpush1.msra.mxu0 %v375
    %1342 = vmatprep.subr.mxu0 0.0
    %1343 = vmatpush1.msra.mxu0 %v372
    %1344 = vmatprep.subr.mxu0 0.0
    %1345 = vmatpush1.msra.mxu0 %v369
    %1346 = vmatprep.subr.mxu0 0.0
    %1347 = vmatpush1.msra.mxu0 %v366
    %1348 = vmatprep.subr.mxu0 0.0
    %1349 = vmatpush1.msra.mxu0 %v363
    %1350 = vmatprep.subr.mxu0 0.0
    %1351 = vmatpush1.msra.mxu0 %v360
    %1352 = vmatprep.subr.mxu0 0.0
    %1353 = vmatpush1.msra.mxu0 %v357
    %1354 = vmatprep.subr.mxu0 0.0
    %1355 = vmatpush1.msra.mxu0 %v354
    %1356 = vmatprep.subr.mxu0 0.0
    %1357 = vmatpush1.msra.mxu0 %v351
    %1358 = vmatprep.subr.mxu0 0.0
    %1359 = vmatpush1.msra.mxu0 %v348
    %1360 = vmatprep.subr.mxu0 0.0
    %1361 = vmatpush2.msra.mxu0 0.0
    %1362 = vmatprep.subr.mxu0 0.0
    %1363 = vmatpush2.msra.mxu0 0.0
    %1364 = vmatprep.subr.mxu0 0.0
    %1365 = vmatpush2.msra.mxu0 0.0
    %1366 = vmatprep.subr.mxu0 0.0
    %1367 = vmatpush2.msra.mxu0 0.0
    %1368 = vmatprep.subr.mxu0 0.0
    %1369 = vmatpush2.msra.mxu0 0.0
    %1370 = vmatprep.subr.mxu0 0.0
    %1371 = vmatpush2.msra.mxu0 0.0
    %1372 = vmatprep.subr.mxu0 0.0
    %1373 = vmatpush2.msra.mxu0 0.0
    %1374 = vmatprep.subr.mxu0 0.0
    %1375 = vmatpush2.msra.mxu0 0.0
    %1376 = vmatprep.subr.mxu0 0.0
    %1377 = vmatpush2.msra.mxu0 0.0
    %1378 = vmatprep.subr.mxu0 0.0
    %1379 = vmatpush2.msra.mxu0 0.0
    %1380 = vmatprep.subr.mxu0 0.0
    %1381 = vmatpush2.msra.mxu0 0.0
    %1382 = vmatprep.subr.mxu0 0.0
    %1383 = vmatpush2.msra.mxu0 0.0
    %1384 = vmatprep.subr.mxu0 0.0
    %1385 = vmatpush2.msra.mxu0 0.0
    %1386 = vmatprep.subr.mxu0 0.0
    %1387 = vmatpush2.msra.mxu0 0.0
    %1388 = vmatprep.subr.mxu0 0.0
    %1389 = vmatpush2.msra.mxu0 0.0
    %1390 = vmatprep.subr.mxu0 0.0
    %1391 = vmatpush2.msra.mxu0 0.0
    %1392 = vmatprep.mubr.f32.mxu0 0.0
    %1393 = vmatmul.mubr.f32.gmra.mxu0 %v1250
    %v1394 = vpop.f32.mrf.mxu0
    %v1395 = vadd.f32 %v407, %v1394
    %v1396 = vpop.f32.mrf.mxu0
    %1397 = vdwg.mxu0
    %v1398 = vadd.f32 %v1254, %v1324
    %v1399 = vxor.u32 %v1398, 2147483648
    %v1400 = vmul.f32 %v1399, 1.442695
    %v1401 = vpow.pop %v1400
    %v1402 = vadd.f32 %v1401, 1.0
    %v1403 = vrcp.pop %v1402
    %v1404 = vmul.f32 1.0, %v1403
    %v1405 = vadd.f32 %v1255, %v1326
    %v1406 = vxor.u32 %v1405, 2147483648
    %v1407 = vmul.f32 %v1406, 1.442695
    %v1408 = vpow.pop %v1407
    %v1409 = vadd.f32 %v1408, 1.0
    %v1410 = vrcp.pop %v1409
    %v1411 = vmul.f32 1.0, %v1410
    %v1412 = vmul.f32 %v1404, %v1395
    %v1413 = vadd.f32 %v1256, %v1412
    %v1414 = vtanh.pop %v1413
    %v1415 = vsub.f32 1.0, %v1411
    %v1416 = vmul.f32 %v1415, %v1414
    %v1417 = vmul.f32 %v1411, %v1250
    %v1418 = vadd.f32 %v1416, %v1417
    %s1419 = smul.u32 6, 3
    %s1420 = smul.addr %s1419, 8
    %s1421 = scalar_lea.vmem [#allocation2], %s1420
    %v1422 = vld [vmem:[%s1421] sm:$0xff]
    %v1423 = vld [vmem:[%s1421 + $0x8] sm:$0xff]
    %v1424 = vld [vmem:[%s1421 + $0x10] sm:$0xff]
    %1425 = vmatprep.subr.mxu0 %v392
    %1426 = vmatpush1.msra.mxu0 %v391
    %1427 = vmatprep.subr.mxu0 %v389
    %1428 = vmatpush1.msra.mxu0 %v388
    %1429 = vmatprep.subr.mxu0 %v386
    %1430 = vmatpush1.msra.mxu0 %v385
    %1431 = vmatprep.subr.mxu0 %v383
    %1432 = vmatpush1.msra.mxu0 %v382
    %1433 = vmatprep.subr.mxu0 %v380
    %1434 = vmatpush1.msra.mxu0 %v379
    %1435 = vmatprep.subr.mxu0 %v377
    %1436 = vmatpush1.msra.mxu0 %v376
    %1437 = vmatprep.subr.mxu0 %v374
    %1438 = vmatpush1.msra.mxu0 %v373
    %1439 = vmatprep.subr.mxu0 %v371
    %1440 = vmatpush1.msra.mxu0 %v370
    %1441 = vmatprep.subr.mxu0 %v368
    %1442 = vmatpush1.msra.mxu0 %v367
    %1443 = vmatprep.subr.mxu0 %v365
    %1444 = vmatpush1.msra.mxu0 %v364
    %1445 = vmatprep.subr.mxu0 %v362
    %1446 = vmatpush1.msra.mxu0 %v361
    %1447 = vmatprep.subr.mxu0 %v359
    %1448 = vmatpush1.msra.mxu0 %v358
    %1449 = vmatprep.subr.mxu0 %v356
    %1450 = vmatpush1.msra.mxu0 %v355
    %1451 = vmatprep.subr.mxu0 %v353
    %1452 = vmatpush1.msra.mxu0 %v352
    %1453 = vmatprep.subr.mxu0 %v350
    %1454 = vmatpush1.msra.mxu0 %v349
    %1455 = vmatprep.subr.mxu0 %v347
    %1456 = vmatpush1.msra.mxu0 %v346
    %1457 = vmatprep.subr.mxu0 0.0
    %1458 = vmatpush2.msra.mxu0 0.0
    %1459 = vmatprep.subr.mxu0 0.0
    %1460 = vmatpush2.msra.mxu0 0.0
    %1461 = vmatprep.subr.mxu0 0.0
    %1462 = vmatpush2.msra.mxu0 0.0
    %1463 = vmatprep.subr.mxu0 0.0
    %1464 = vmatpush2.msra.mxu0 0.0
    %1465 = vmatprep.subr.mxu0 0.0
    %1466 = vmatpush2.msra.mxu0 0.0
    %1467 = vmatprep.subr.mxu0 0.0
    %1468 = vmatpush2.msra.mxu0 0.0
    %1469 = vmatprep.subr.mxu0 0.0
    %1470 = vmatpush2.msra.mxu0 0.0
    %1471 = vmatprep.subr.mxu0 0.0
    %1472 = vmatpush2.msra.mxu0 0.0
    %1473 = vmatprep.subr.mxu0 0.0
    %1474 = vmatpush2.msra.mxu0 0.0
    %1475 = vmatprep.subr.mxu0 0.0
    %1476 = vmatpush2.msra.mxu0 0.0
    %1477 = vmatprep.subr.mxu0 0.0
    %1478 = vmatpush2.msra.mxu0 0.0
    %1479 = vmatprep.subr.mxu0 0.0
    %1480 = vmatpush2.msra.mxu0 0.0
    %1481 = vmatprep.subr.mxu0 0.0
    %1482 = vmatpush2.msra.mxu0 0.0
    %1483 = vmatprep.subr.mxu0 0.0
    %1484 = vmatpush2.msra.mxu0 0.0
    %1485 = vmatprep.subr.mxu0 0.0
    %1486 = vmatpush2.msra.mxu0 0.0
    %1487 = vmatprep.subr.mxu0 0.0
    %1488 = vmatpush2.msra.mxu0 0.0
    %1489 = vmatprep.mubr.f32.mxu0 0.0
    %1490 = vmatmul.mubr.f32.gmra.mxu0 %v1418
    %v1491 = vpop.f32.mrf.mxu0
    %v1492 = vadd.f32 %v399, %v1491
    %v1493 = vpop.f32.mrf.mxu0
    %v1494 = vadd.f32 %v403, %v1493
    %1495 = vdwg.mxu0
    %1496 = vmatprep.subr.mxu0 0.0
    %1497 = vmatpush1.msra.mxu0 %v393
    %1498 = vmatprep.subr.mxu0 0.0
    %1499 = vmatpush1.msra.mxu0 %v390
    %1500 = vmatprep.subr.mxu0 0.0
    %1501 = vmatpush1.msra.mxu0 %v387
    %1502 = vmatprep.subr.mxu0 0.0
    %1503 = vmatpush1.msra.mxu0 %v384
    %1504 = vmatprep.subr.mxu0 0.0
    %1505 = vmatpush1.msra.mxu0 %v381
    %1506 = vmatprep.subr.mxu0 0.0
    %1507 = vmatpush1.msra.mxu0 %v378
    %1508 = vmatprep.subr.mxu0 0.0
    %1509 = vmatpush1.msra.mxu0 %v375
    %1510 = vmatprep.subr.mxu0 0.0
    %1511 = vmatpush1.msra.mxu0 %v372
    %1512 = vmatprep.subr.mxu0 0.0
    %1513 = vmatpush1.msra.mxu0 %v369
    %1514 = vmatprep.subr.mxu0 0.0
    %1515 = vmatpush1.msra.mxu0 %v366
    %1516 = vmatprep.subr.mxu0 0.0
    %1517 = vmatpush1.msra.mxu0 %v363
    %1518 = vmatprep.subr.mxu0 0.0
    %1519 = vmatpush1.msra.mxu0 %v360
    %1520 = vmatprep.subr.mxu0 0.0
    %1521 = vmatpush1.msra.mxu0 %v357
    %1522 = vmatprep.subr.mxu0 0.0
    %1523 = vmatpush1.msra.mxu0 %v354
    %1524 = vmatprep.subr.mxu0 0.0
    %1525 = vmatpush1.msra.mxu0 %v351
    %1526 = vmatprep.subr.mxu0 0.0
    %1527 = vmatpush1.msra.mxu0 %v348
    %1528 = vmatprep.subr.mxu0 0.0
    %1529 = vmatpush2.msra.mxu0 0.0
    %1530 = vmatprep.subr.mxu0 0.0
    %1531 = vmatpush2.msra.mxu0 0.0
    %1532 = vmatprep.subr.mxu0 0.0
    %1533 = vmatpush2.msra.mxu0 0.0
    %1534 = vmatprep.subr.mxu0 0.0
    %1535 = vmatpush2.msra.mxu0 0.0
    %1536 = vmatprep.subr.mxu0 0.0
    %1537 = vmatpush2.msra.mxu0 0.0
    %1538 = vmatprep.subr.mxu0 0.0
    %1539 = vmatpush2.msra.mxu0 0.0
    %1540 = vmatprep.subr.mxu0 0.0
    %1541 = vmatpush2.msra.mxu0 0.0
    %1542 = vmatprep.subr.mxu0 0.0
    %1543 = vmatpush2.msra.mxu0 0.0
    %1544 = vmatprep.subr.mxu0 0.0
    %1545 = vmatpush2.msra.mxu0 0.0
    %1546 = vmatprep.subr.mxu0 0.0
    %1547 = vmatpush2.msra.mxu0 0.0
    %1548 = vmatprep.subr.mxu0 0.0
    %1549 = vmatpush2.msra.mxu0 0.0
    %1550 = vmatprep.subr.mxu0 0.0
    %1551 = vmatpush2.msra.mxu0 0.0
    %1552 = vmatprep.subr.mxu0 0.0
    %1553 = vmatpush2.msra.mxu0 0.0
    %1554 = vmatprep.subr.mxu0 0.0
    %1555 = vmatpush2.msra.mxu0 0.0
    %1556 = vmatprep.subr.mxu0 0.0
    %1557 = vmatpush2.msra.mxu0 0.0
    %1558 = vmatprep.subr.mxu0 0.0
    %1559 = vmatpush2.msra.mxu0 0.0
    %1560 = vmatprep.mubr.f32.mxu0 0.0
    %1561 = vmatmul.mubr.f32.gmra.mxu0 %v1418
    %v1562 = vpop.f32.mrf.mxu0
    %v1563 = vadd.f32 %v407, %v1562
    %v1564 = vpop.f32.mrf.mxu0
    %1565 = vdwg.mxu0
    %v1566 = vadd.f32 %v1422, %v1492
    %v1567 = vxor.u32 %v1566, 2147483648
    %v1568 = vmul.f32 %v1567, 1.442695
    %v1569 = vpow.pop %v1568
    %v1570 = vadd.f32 %v1569, 1.0
    %v1571 = vrcp.pop %v1570
    %v1572 = vmul.f32 1.0, %v1571
    %v1573 = vadd.f32 %v1423, %v1494
    %v1574 = vxor.u32 %v1573, 2147483648
    %v1575 = vmul.f32 %v1574, 1.442695
    %v1576 = vpow.pop %v1575
    %v1577 = vadd.f32 %v1576, 1.0
    %v1578 = vrcp.pop %v1577
    %v1579 = vmul.f32 1.0, %v1578
    %v1580 = vmul.f32 %v1572, %v1563
    %v1581 = vadd.f32 %v1424, %v1580
    %v1582 = vtanh.pop %v1581
    %v1583 = vsub.f32 1.0, %v1579
    %v1584 = vmul.f32 %v1583, %v1582
    %v1585 = vmul.f32 %v1579, %v1418
    %v1586 = vadd.f32 %v1584, %v1585
    %s1587 = smul.u32 7, 3
    %s1588 = smul.addr %s1587, 8
    %s1589 = scalar_lea.vmem [#allocation2], %s1588
    %v1590 = vld [vmem:[%s1589] sm:$0xff]
    %v1591 = vld [vmem:[%s1589 + $0x8] sm:$0xff]
    %v1592 = vld [vmem:[%s1589 + $0x10] sm:$0xff]
    %1593 = vmatprep.subr.mxu0 %v392
    %1594 = vmatpush1.msra.mxu0 %v391
    %1595 = vmatprep.subr.mxu0 %v389
    %1596 = vmatpush1.msra.mxu0 %v388
    %1597 = vmatprep.subr.mxu0 %v386
    %1598 = vmatpush1.msra.mxu0 %v385
    %1599 = vmatprep.subr.mxu0 %v383
    %1600 = vmatpush1.msra.mxu0 %v382
    %1601 = vmatprep.subr.mxu0 %v380
    %1602 = vmatpush1.msra.mxu0 %v379
    %1603 = vmatprep.subr.mxu0 %v377
    %1604 = vmatpush1.msra.mxu0 %v376
    %1605 = vmatprep.subr.mxu0 %v374
    %1606 = vmatpush1.msra.mxu0 %v373
    %1607 = vmatprep.subr.mxu0 %v371
    %1608 = vmatpush1.msra.mxu0 %v370
    %1609 = vmatprep.subr.mxu0 %v368
    %1610 = vmatpush1.msra.mxu0 %v367
    %1611 = vmatprep.subr.mxu0 %v365
    %1612 = vmatpush1.msra.mxu0 %v364
    %1613 = vmatprep.subr.mxu0 %v362
    %1614 = vmatpush1.msra.mxu0 %v361
    %1615 = vmatprep.subr.mxu0 %v359
    %1616 = vmatpush1.msra.mxu0 %v358
    %1617 = vmatprep.subr.mxu0 %v356
    %1618 = vmatpush1.msra.mxu0 %v355
    %1619 = vmatprep.subr.mxu0 %v353
    %1620 = vmatpush1.msra.mxu0 %v352
    %1621 = vmatprep.subr.mxu0 %v350
    %1622 = vmatpush1.msra.mxu0 %v349
    %1623 = vmatprep.subr.mxu0 %v347
    %1624 = vmatpush1.msra.mxu0 %v346
    %1625 = vmatprep.subr.mxu0 0.0
    %1626 = vmatpush2.msra.mxu0 0.0
    %1627 = vmatprep.subr.mxu0 0.0
    %1628 = vmatpush2.msra.mxu0 0.0
    %1629 = vmatprep.subr.mxu0 0.0
    %1630 = vmatpush2.msra.mxu0 0.0
    %1631 = vmatprep.subr.mxu0 0.0
    %1632 = vmatpush2.msra.mxu0 0.0
    %1633 = vmatprep.subr.mxu0 0.0
    %1634 = vmatpush2.msra.mxu0 0.0
    %1635 = vmatprep.subr.mxu0 0.0
    %1636 = vmatpush2.msra.mxu0 0.0
    %1637 = vmatprep.subr.mxu0 0.0
    %1638 = vmatpush2.msra.mxu0 0.0
    %1639 = vmatprep.subr.mxu0 0.0
    %1640 = vmatpush2.msra.mxu0 0.0
    %1641 = vmatprep.subr.mxu0 0.0
    %1642 = vmatpush2.msra.mxu0 0.0
    %1643 = vmatprep.subr.mxu0 0.0
    %1644 = vmatpush2.msra.mxu0 0.0
    %1645 = vmatprep.subr.mxu0 0.0
    %1646 = vmatpush2.msra.mxu0 0.0
    %1647 = vmatprep.subr.mxu0 0.0
    %1648 = vmatpush2.msra.mxu0 0.0
    %1649 = vmatprep.subr.mxu0 0.0
    %1650 = vmatpush2.msra.mxu0 0.0
    %1651 = vmatprep.subr.mxu0 0.0
    %1652 = vmatpush2.msra.mxu0 0.0
    %1653 = vmatprep.subr.mxu0 0.0
    %1654 = vmatpush2.msra.mxu0 0.0
    %1655 = vmatprep.subr.mxu0 0.0
    %1656 = vmatpush2.msra.mxu0 0.0
    %1657 = vmatprep.mubr.f32.mxu0 0.0
    %1658 = vmatmul.mubr.f32.gmra.mxu0 %v1586
    %v1659 = vpop.f32.mrf.mxu0
    %v1660 = vadd.f32 %v399, %v1659
    %v1661 = vpop.f32.mrf.mxu0
    %v1662 = vadd.f32 %v403, %v1661
    %1663 = vdwg.mxu0
    %1664 = vmatprep.subr.mxu0 0.0
    %1665 = vmatpush1.msra.mxu0 %v393
    %1666 = vmatprep.subr.mxu0 0.0
    %1667 = vmatpush1.msra.mxu0 %v390
    %1668 = vmatprep.subr.mxu0 0.0
    %1669 = vmatpush1.msra.mxu0 %v387
    %1670 = vmatprep.subr.mxu0 0.0
    %1671 = vmatpush1.msra.mxu0 %v384
    %1672 = vmatprep.subr.mxu0 0.0
    %1673 = vmatpush1.msra.mxu0 %v381
    %1674 = vmatprep.subr.mxu0 0.0
    %1675 = vmatpush1.msra.mxu0 %v378
    %1676 = vmatprep.subr.mxu0 0.0
    %1677 = vmatpush1.msra.mxu0 %v375
    %1678 = vmatprep.subr.mxu0 0.0
    %1679 = vmatpush1.msra.mxu0 %v372
    %1680 = vmatprep.subr.mxu0 0.0
    %1681 = vmatpush1.msra.mxu0 %v369
    %1682 = vmatprep.subr.mxu0 0.0
    %1683 = vmatpush1.msra.mxu0 %v366
    %1684 = vmatprep.subr.mxu0 0.0
    %1685 = vmatpush1.msra.mxu0 %v363
    %1686 = vmatprep.subr.mxu0 0.0
    %1687 = vmatpush1.msra.mxu0 %v360
    %1688 = vmatprep.subr.mxu0 0.0
    %1689 = vmatpush1.msra.mxu0 %v357
    %1690 = vmatprep.subr.mxu0 0.0
    %1691 = vmatpush1.msra.mxu0 %v354
    %1692 = vmatprep.subr.mxu0 0.0
    %1693 = vmatpush1.msra.mxu0 %v351
    %1694 = vmatprep.subr.mxu0 0.0
    %1695 = vmatpush1.msra.mxu0 %v348
    %1696 = vmatprep.subr.mxu0 0.0
    %1697 = vmatpush2.msra.mxu0 0.0
    %1698 = vmatprep.subr.mxu0 0.0
    %1699 = vmatpush2.msra.mxu0 0.0
    %1700 = vmatprep.subr.mxu0 0.0
    %1701 = vmatpush2.msra.mxu0 0.0
    %1702 = vmatprep.subr.mxu0 0.0
    %1703 = vmatpush2.msra.mxu0 0.0
    %1704 = vmatprep.subr.mxu0 0.0
    %1705 = vmatpush2.msra.mxu0 0.0
    %1706 = vmatprep.subr.mxu0 0.0
    %1707 = vmatpush2.msra.mxu0 0.0
    %1708 = vmatprep.subr.mxu0 0.0
    %1709 = vmatpush2.msra.mxu0 0.0
    %1710 = vmatprep.subr.mxu0 0.0
    %1711 = vmatpush2.msra.mxu0 0.0
    %1712 = vmatprep.subr.mxu0 0.0
    %1713 = vmatpush2.msra.mxu0 0.0
    %1714 = vmatprep.subr.mxu0 0.0
    %1715 = vmatpush2.msra.mxu0 0.0
    %1716 = vmatprep.subr.mxu0 0.0
    %1717 = vmatpush2.msra.mxu0 0.0
    %1718 = vmatprep.subr.mxu0 0.0
    %1719 = vmatpush2.msra.mxu0 0.0
    %1720 = vmatprep.subr.mxu0 0.0
    %1721 = vmatpush2.msra.mxu0 0.0
    %1722 = vmatprep.subr.mxu0 0.0
    %1723 = vmatpush2.msra.mxu0 0.0
    %1724 = vmatprep.subr.mxu0 0.0
    %1725 = vmatpush2.msra.mxu0 0.0
    %1726 = vmatprep.subr.mxu0 0.0
    %1727 = vmatpush2.msra.mxu0 0.0
    %1728 = vmatprep.mubr.f32.mxu0 0.0
    %1729 = vmatmul.mubr.f32.gmra.mxu0 %v1586
    %v1730 = vpop.f32.mrf.mxu0
    %v1731 = vadd.f32 %v407, %v1730
    %v1732 = vpop.f32.mrf.mxu0
    %1733 = vdwg.mxu0
    %v1734 = vadd.f32 %v1590, %v1660
    %v1735 = vxor.u32 %v1734, 2147483648
    %v1736 = vmul.f32 %v1735, 1.442695
    %v1737 = vpow.pop %v1736
    %v1738 = vadd.f32 %v1737, 1.0
    %v1739 = vrcp.pop %v1738
    %v1740 = vmul.f32 1.0, %v1739
    %v1741 = vadd.f32 %v1591, %v1662
    %v1742 = vxor.u32 %v1741, 2147483648
    %v1743 = vmul.f32 %v1742, 1.442695
    %v1744 = vpow.pop %v1743
    %v1745 = vadd.f32 %v1744, 1.0
    %v1746 = vrcp.pop %v1745
    %v1747 = vmul.f32 1.0, %v1746
    %v1748 = vmul.f32 %v1740, %v1731
    %v1749 = vadd.f32 %v1592, %v1748
    %v1750 = vtanh.pop %v1749
    %v1751 = vsub.f32 1.0, %v1747
    %v1752 = vmul.f32 %v1751, %v1750
    %v1753 = vmul.f32 %v1747, %v1586
    %v1754 = vadd.f32 %v1752, %v1753
    %v1755 = vmax.f32 %v1754, 0.0
    %v1756 = vld [vmem:[%s5] sm:$0xff]
    %v1757 = vld [vmem:[%s5 + $0x8] sm:$0xff]
    %v1758 = vld [vmem:[%s5 + $0x10] sm:$0xff]
    %v1759 = vld [vmem:[%s5 + $0x18] sm:$0xff]
    %v1760 = vld [vmem:[%s5 + $0x20] sm:$0xff]
    %v1761 = vld [vmem:[%s5 + $0x28] sm:$0xff]
    %v1762 = vld [vmem:[%s5 + $0x30] sm:$0xff]
    %v1763 = vld [vmem:[%s5 + $0x38] sm:$0xff]
    %v1764 = vld [vmem:[%s5 + $0x40] sm:$0xff]
    %v1765 = vld [vmem:[%s5 + $0x48] sm:$0xff]
    %v1766 = vld [vmem:[%s5 + $0x50] sm:$0xff]
    %v1767 = vld [vmem:[%s5 + $0x58] sm:$0xff]
    %v1768 = vld [vmem:[%s5 + $0x60] sm:$0xff]
    %v1769 = vld [vmem:[%s5 + $0x68] sm:$0xff]
    %v1770 = vld [vmem:[%s5 + $0x70] sm:$0xff]
    %v1771 = vld [vmem:[%s5 + $0x78] sm:$0xff]
    %v1772 = vld [vmem:[#allocation3] sm:$0x1]
    %v1774 = vlaneseq
    %v1775 = vshrl.u32 %v1774, 7
    %v1776 = vsub.s32 0, %v1775
    %v1777 = vrot.slane %v1772, %v1776
    %1779 = vmatprep.subr.mxu0 0.0
    %1780 = vmatpush1.msra.mxu0 %v1771
    %1781 = vmatprep.subr.mxu0 0.0
    %1782 = vmatpush1.msra.mxu0 %v1770
    %1783 = vmatprep.subr.mxu0 0.0
    %1784 = vmatpush1.msra.mxu0 %v1769
    %1785 = vmatprep.subr.mxu0 0.0
    %1786 = vmatpush1.msra.mxu0 %v1768
    %1787 = vmatprep.subr.mxu0 0.0
    %1788 = vmatpush1.msra.mxu0 %v1767
    %1789 = vmatprep.subr.mxu0 0.0
    %1790 = vmatpush1.msra.mxu0 %v1766
    %1791 = vmatprep.subr.mxu0 0.0
    %1792 = vmatpush1.msra.mxu0 %v1765
    %1793 = vmatprep.subr.mxu0 0.0
    %1794 = vmatpush1.msra.mxu0 %v1764
    %1795 = vmatprep.subr.mxu0 0.0
    %1796 = vmatpush1.msra.mxu0 %v1763
    %1797 = vmatprep.subr.mxu0 0.0
    %1798 = vmatpush1.msra.mxu0 %v1762
    %1799 = vmatprep.subr.mxu0 0.0
    %1800 = vmatpush1.msra.mxu0 %v1761
    %1801 = vmatprep.subr.mxu0 0.0
    %1802 = vmatpush1.msra.mxu0 %v1760
    %1803 = vmatprep.subr.mxu0 0.0
    %1804 = vmatpush1.msra.mxu0 %v1759
    %1805 = vmatprep.subr.mxu0 0.0
    %1806 = vmatpush1.msra.mxu0 %v1758
    %1807 = vmatprep.subr.mxu0 0.0
    %1808 = vmatpush1.msra.mxu0 %v1757
    %1809 = vmatprep.subr.mxu0 0.0
    %1810 = vmatpush1.msra.mxu0 %v1756
    %1811 = vmatprep.subr.mxu0 0.0
    %1812 = vmatpush2.msra.mxu0 0.0
    %1813 = vmatprep.subr.mxu0 0.0
    %1814 = vmatpush2.msra.mxu0 0.0
    %1815 = vmatprep.subr.mxu0 0.0
    %1816 = vmatpush2.msra.mxu0 0.0
    %1817 = vmatprep.subr.mxu0 0.0
    %1818 = vmatpush2.msra.mxu0 0.0
    %1819 = vmatprep.subr.mxu0 0.0
    %1820 = vmatpush2.msra.mxu0 0.0
    %1821 = vmatprep.subr.mxu0 0.0
    %1822 = vmatpush2.msra.mxu0 0.0
    %1823 = vmatprep.subr.mxu0 0.0
    %1824 = vmatpush2.msra.mxu0 0.0
    %1825 = vmatprep.subr.mxu0 0.0
    %1826 = vmatpush2.msra.mxu0 0.0
    %1827 = vmatprep.subr.mxu0 0.0
    %1828 = vmatpush2.msra.mxu0 0.0
    %1829 = vmatprep.subr.mxu0 0.0
    %1830 = vmatpush2.msra.mxu0 0.0
    %1831 = vmatprep.subr.mxu0 0.0
    %1832 = vmatpush2.msra.mxu0 0.0
    %1833 = vmatprep.subr.mxu0 0.0
    %1834 = vmatpush2.msra.mxu0 0.0
    %1835 = vmatprep.subr.mxu0 0.0
    %1836 = vmatpush2.msra.mxu0 0.0
    %1837 = vmatprep.subr.mxu0 0.0
    %1838 = vmatpush2.msra.mxu0 0.0
    %1839 = vmatprep.subr.mxu0 0.0
    %1840 = vmatpush2.msra.mxu0 0.0
    %1841 = vmatprep.subr.mxu0 0.0
    %1842 = vmatpush2.msra.mxu0 0.0
    %1843 = vmatprep.mubr.f32.mxu0 0.0
    %1844 = vmatmul.mubr.f32.gmra.mxu0 %v1755
    %v1845 = vpop.f32.mrf.mxu0
    %v1846 = vadd.f32 %v1777, %v1845
    %v1847 = vpop.f32.mrf.mxu0
    %1848 = vdwg.mxu0
    %vm1849 = vcmask 7168
    %1850 = vst.msk [vmem:[%s7] sm:$0xff] %vm1849, %v1846
    // Predicated region
    $region34: #{tpu_custom_call.1} parent=1 // pred_check
      _
    $region35: #{tpu_custom_call.1} parent=1 // pred_check_branch
      %1852 = sbr.rel (0) target = $region37
    $region36: #{tpu_custom_call.1} parent=1 // pred_region
      _
    $region37: #{tpu_custom_call.1} parent=1 // pred_fallthru
      _
    // Predicated region
    $region38: #{tpu_custom_call.1} parent=1 // pred_check
      _
    $region39: #{tpu_custom_call.1} parent=1 // pred_check_branch
      %1854 = sbr.rel (0) target = $region41
    $region40: #{tpu_custom_call.1} parent=1 // pred_region
      _
    $region41: #{tpu_custom_call.1} parent=1 // pred_fallthru
      _
    %1855 = vsyncpa [#allocation5], 1

</llo_original>
